<compile_context>
chip_gen: v7x
topology: tpu7x:2x2x1
jax: 0.10.0
libtpu: 0.0.40
codegen_flags: <defaults>
</compile_context>

<pallas_src>
import functools

import jax
import jax.numpy as jnp
from jax.experimental import pallas as pl
from jax.experimental.pallas import tpu as pltpu

LANE = 128  # TPU vreg lane width


def _basic_block_kernel(x_ref, w1_ref, w2_ref, fold_ref, expand_ref, bn_ref,
                        o_ref, xp_ref, lhs_ref, *, n, h, w, c, eps):
    """Fused conv3x3 -> BN -> ReLU -> conv3x3 -> BN -> ReLU, all in VMEM.

    x_ref      : (N*H, W*C)      activation slab (channels fastest on lanes)
    w*_ref     : (3*128, W*C)    block-Toeplitz conv weights (zero-padded rows)
    fold_ref   : (W*C, C)        lane-sum -> per-channel fold matrix
    expand_ref : (C, W*C)        per-channel -> lane broadcast matrix
    bn_ref     : (4, C)          rows: gamma1, beta1, gamma2, beta2
    o_ref      : (N*H, W*C)      output slab
    xp_ref     : (8 + N*(H+8), W*C)  zero-padded row scratch (H halo)
    lhs_ref    : (N*H, 3*128)    im2col row-slab scratch
    """
    rows_img = h + 8          # padded rows reserved per image in xp_ref
    wc = w * c                # lane width of an activation row
    cnt = float(n * h * w)    # elements per channel for the BN statistics

    # One-time zeroing: xp_ref's non-data rows are the conv's H zero padding;
    # lhs_ref's lanes [wc, 128) of each tap block stay zero and line up with
    # the zero rows of the block-Toeplitz weights.
    xp_ref[...] = jnp.zeros_like(xp_ref)
    lhs_ref[...] = jnp.zeros_like(lhs_ref)

    fold = fold_ref[...]        # (wc, c)
    expand = expand_ref[...]    # (c, wc)

    def conv_bn_relu(act, w_big_ref, gamma, beta):
        # 1) Scatter the activation slab into the zero-padded row buffer.
        #    Stores land at sublane offsets that are multiples of 8 (aligned).
        for i in range(n):
            base = 8 + i * rows_img
            xp_ref[base:base + h, :] = act[i * h:(i + 1) * h, :]

        # 2) Build the row-slab im2col buffer: tap r gathers rows (y - 1 + r);
        #    the surrounding zero rows of xp_ref provide the H halo for free.
        #    Store targets are tile-aligned (lane offsets 0/128/256).
        for i in range(n):
            base = 8 + i * rows_img
            for r in range(3):
                lhs_ref[i * h:(i + 1) * h, r * LANE:r * LANE + wc] = (
                    xp_ref[base + r - 1:base + r - 1 + h, :])

        # 3) The whole 3x3 conv as a single MXU matmul against the
        #    block-Toeplitz weights (W zero-padding is encoded in the weights).
        acc = jnp.dot(lhs_ref[...], w_big_ref[...],
                      preferred_element_type=jnp.float32)          # (n*h, wc)

        # 4) Training-mode BatchNorm statistics, two-pass, per channel.
        ch_sum = jnp.dot(jnp.sum(acc, axis=0, keepdims=True), fold,
                         preferred_element_type=jnp.float32)       # (1, c)
        mean_c = ch_sum / cnt
        mean_l = jnp.dot(mean_c, expand,
                         preferred_element_type=jnp.float32)       # (1, wc)
        cen = acc - mean_l
        var_c = jnp.dot(jnp.sum(cen * cen, axis=0, keepdims=True), fold,
                        preferred_element_type=jnp.float32) / cnt  # (1, c)
        scale_c = gamma * jax.lax.rsqrt(var_c + eps)                # (1, c)
        scale_l = jnp.dot(scale_c, expand,
                          preferred_element_type=jnp.float32)      # (1, wc)
        bias_l = jnp.dot(beta, expand,
                         preferred_element_type=jnp.float32)       # (1, wc)

        # 5) Fused affine BN apply + ReLU.
        return jnp.maximum(cen * scale_l + bias_l, 0.0)

    h1 = conv_bn_relu(x_ref[...], w1_ref, bn_ref[0:1, :], bn_ref[1:2, :])
    h2 = conv_bn_relu(h1,         w2_ref, bn_ref[2:3, :], bn_ref[3:4, :])
    o_ref[...] = h2


def _toeplitz_weight(w_hwio, width):
    """(3,3,Cin,Cout) HWIO conv weight -> (3*128, W*Cout) block-Toeplitz matrix.

    Row index  = kh*128 + w_in*Cin + cin   (rows [W*Cin, 128) of each block = 0)
    Col index  = w_out*Cout + cout
    Entry      = w_hwio[kh, w_in - w_out + 1, cin, cout] if the horizontal tap
                 is in range, else 0 (this encodes the W zero-padding).
    """
    kh_n, kw_n, cin, cout = w_hwio.shape
    assert width * cin <= LANE, "W*C must fit in one 128-lane block"
    # S[kw, w_in, w_out] = 1 iff w_in == w_out + kw - 1
    s = jnp.stack([jnp.eye(width, k=1 - kw, dtype=w_hwio.dtype)
                   for kw in range(kw_n)])                      # (KW, W, W)
    blocks = []
    for kh in range(kh_n):
        blk = jnp.einsum("kpw,kio->piwo", s, w_hwio[kh])
        blk = blk.reshape(width * cin, width * cout)
        blk = jnp.pad(blk, ((0, LANE - width * cin), (0, 0)))
        blocks.append(blk)
    return jnp.concatenate(blocks, axis=0)                      # (3*128, W*Cout)


def basic_block_forward(x_nchw, w1_oihw, w2_oihw, g1, b1, g2, b2,
                        eps=1e-5, stride=1):
    """BasicBlock.forward: conv3x3 -> BN -> ReLU -> conv3x3 -> BN -> ReLU."""
    # TODO(synk): stride > 1 for conv1 not implemented (BasicBlock default is 1).
    assert stride == 1
    N, C, H, W = x_nchw.shape
    assert H % 8 == 0, "H must be a multiple of 8 for aligned row stores"
    assert W * C <= LANE, "W*C must fit in one 128-lane block"

    # Lane-dense activation slab: (N, C, H, W) -> (N*H, W*C).
    x2d = jnp.transpose(x_nchw, (0, 2, 3, 1)).reshape(N * H, W * C)
    x2d = x2d.astype(jnp.float32)

    w1b = _toeplitz_weight(jnp.transpose(w1_oihw, (2, 3, 1, 0)), W)  # OIHW->HWIO
    w2b = _toeplitz_weight(jnp.transpose(w2_oihw, (2, 3, 1, 0)), W)
    fold = jnp.tile(jnp.eye(C, dtype=jnp.float32), (W, 1))           # (W*C, C)
    expand = jnp.transpose(fold)                                     # (C, W*C)
    bn = jnp.stack([g1, b1, g2, b2]).astype(jnp.float32)             # (4, C)

    kernel = functools.partial(_basic_block_kernel,
                               n=N, h=H, w=W, c=C, eps=float(eps))
    out2d = pl.pallas_call(
        kernel,
        out_shape=jax.ShapeDtypeStruct((N * H, W * C), jnp.float32),
        in_specs=[pl.BlockSpec(memory_space=pltpu.MemorySpace.VMEM)] * 6,
        out_specs=pl.BlockSpec(memory_space=pltpu.MemorySpace.VMEM),
        scratch_shapes=[
            pltpu.VMEM((8 + N * (H + 8), W * C), jnp.float32),  # padded rows
            pltpu.VMEM((N * H, 3 * LANE), jnp.float32),         # im2col slab
        ],
    )(x2d, w1b, w2b, fold, expand, bn)

    # (N*H, W*C) -> NCHW
    return jnp.transpose(out2d.reshape(N, H, W, C), (0, 3, 1, 2))


def _reference_forward(x_nchw, w1_oihw, w2_oihw, g1, b1, g2, b2, eps=1e-5):
    """Pure-JAX reference matching PyTorch semantics (NCHW / OIHW)."""
    def conv(x, w):
        return jax.lax.conv_general_dilated(
            x, w, window_strides=(1, 1), padding=((1, 1), (1, 1)),
            dimension_numbers=("NCHW", "OIHW", "NCHW"))

    def bn_relu(y, g, b):
        mean = jnp.mean(y, axis=(0, 2, 3), keepdims=True)
        var = jnp.mean((y - mean) ** 2, axis=(0, 2, 3), keepdims=True)
        yn = (y - mean) * jax.lax.rsqrt(var + eps)
        yn = yn * g.reshape(1, -1, 1, 1) + b.reshape(1, -1, 1, 1)
        return jnp.maximum(yn, 0.0)

    y = bn_relu(conv(x_nchw, w1_oihw), g1, b1)
    return bn_relu(conv(y, w2_oihw), g2, b2)


if __name__ == "__main__":
    # BasicBlock(planes=4), input x: (N, C, H, W) = (2, 4, 16, 16)
    N, C, H, W = 2, 4, 16, 16
    key = jax.random.PRNGKey(0)
    k1, k2, k3, k4, k5 = jax.random.split(key, 5)

    x = jax.random.normal(k1, (N, C, H, W), jnp.float32)
    # conv weights: (out_planes, in_planes, 3, 3) as in nn.Conv2d (bias=False)
    w1 = jax.random.normal(k2, (C, C, 3, 3), jnp.float32) * 0.1
    w2 = jax.random.normal(k3, (C, C, 3, 3), jnp.float32) * 0.1
    # BN affine params: (planes,)
    g1 = 1.0 + 0.1 * jax.random.normal(k4, (C,), jnp.float32)
    b1 = 0.1 * jax.random.normal(k5, (C,), jnp.float32)
    g2 = jnp.ones((C,), jnp.float32)    # PyTorch default BN init
    b2 = jnp.zeros((C,), jnp.float32)

    out = jax.block_until_ready(
        jax.jit(basic_block_forward)(x, w1, w2, g1, b1, g2, b2))
    ref = jax.block_until_ready(_reference_forward(x, w1, w2, g1, b1, g2, b2))

    assert out.shape == (N, C, H, W) and out.dtype == jnp.float32
    max_err = float(jnp.max(jnp.abs(out - ref)))
    assert jnp.allclose(out, ref, rtol=1e-3, atol=1e-3), f"max_err={max_err}"
    print("KERNEL_OK")
</pallas_src>

<mosaic_0001>
module attributes {stable_mosaic.version = 11 : i64} {
  func.func @_basic_block_kernel(%arg0: memref<32x64xf32, #tpu.memory_space<vmem>>, %arg1: memref<384x64xf32, #tpu.memory_space<vmem>>, %arg2: memref<384x64xf32, #tpu.memory_space<vmem>>, %arg3: memref<64x4xf32, #tpu.memory_space<vmem>>, %arg4: memref<4x64xf32, #tpu.memory_space<vmem>>, %arg5: memref<4x4xf32, #tpu.memory_space<vmem>>, %arg6: memref<32x64xf32, #tpu.memory_space<vmem>>, %arg7: memref<56x64xf32, #tpu.memory_space<vmem>>, %arg8: memref<32x384xf32, #tpu.memory_space<vmem>>) attributes {dimension_semantics = [], scalar_prefetch = 0 : i64, scratch_operands = 2 : i64, tpu.core_type = #tpu.core_type<tc>} {
    %cst = arith.constant 0.000000e+00 : f32
    %0 = vector.broadcast %cst : f32 to vector<56x64xf32>
    %c0 = arith.constant 0 : index
    %c0_0 = arith.constant 0 : index
    %1 = vector.load %arg7[%c0, %c0_0] : memref<56x64xf32, #tpu.memory_space<vmem>>, vector<56x64xf32>
    tpu.vector_store %arg7[%c0, %c0_0], %0 {strides = array<i32>} : memref<56x64xf32, #tpu.memory_space<vmem>>, vector<56x64xf32>,
    %cst_1 = arith.constant 0.000000e+00 : f32
    %2 = vector.broadcast %cst_1 : f32 to vector<32x384xf32>
    %c0_2 = arith.constant 0 : index
    %c0_3 = arith.constant 0 : index
    %3 = vector.load %arg8[%c0_2, %c0_3] : memref<32x384xf32, #tpu.memory_space<vmem>>, vector<32x384xf32>
    tpu.vector_store %arg8[%c0_2, %c0_3], %2 {strides = array<i32>} : memref<32x384xf32, #tpu.memory_space<vmem>>, vector<32x384xf32>,
    %c0_4 = arith.constant 0 : index
    %c0_5 = arith.constant 0 : index
    %4 = vector.load %arg3[%c0_4, %c0_5] : memref<64x4xf32, #tpu.memory_space<vmem>>, vector<64x4xf32>
    %c0_6 = arith.constant 0 : index
    %c0_7 = arith.constant 0 : index
    %5 = vector.load %arg4[%c0_6, %c0_7] : memref<4x64xf32, #tpu.memory_space<vmem>>, vector<4x64xf32>
    %c0_8 = arith.constant 0 : index
    %c0_9 = arith.constant 0 : index
    %6 = vector.load %arg0[%c0_8, %c0_9] : memref<32x64xf32, #tpu.memory_space<vmem>>, vector<32x64xf32>
    %c0_10 = arith.constant 0 : index
    %c0_11 = arith.constant 0 : index
    %7 = vector.load %arg5[%c0_10, %c0_11] : memref<4x4xf32, #tpu.memory_space<vmem>>, vector<1x4xf32>
    %c1 = arith.constant 1 : index
    %c0_12 = arith.constant 0 : index
    %8 = vector.load %arg5[%c1, %c0_12] : memref<4x4xf32, #tpu.memory_space<vmem>>, vector<1x4xf32>
    %9 = vector.extract_strided_slice %6 {offsets = [0, 0], sizes = [16, 64], strides = [1, 1]} : vector<32x64xf32> to vector<16x64xf32>
    %c8 = arith.constant 8 : index
    %c0_13 = arith.constant 0 : index
    %10 = vector.load %arg7[%c8, %c0_13] : memref<56x64xf32, #tpu.memory_space<vmem>>, vector<16x64xf32>
    tpu.vector_store %arg7[%c8, %c0_13], %9 {strides = array<i32>} : memref<56x64xf32, #tpu.memory_space<vmem>>, vector<16x64xf32>,
    %11 = vector.extract_strided_slice %6 {offsets = [16, 0], sizes = [16, 64], strides = [1, 1]} : vector<32x64xf32> to vector<16x64xf32>
    %c32 = arith.constant 32 : index
    %c0_14 = arith.constant 0 : index
    %12 = vector.load %arg7[%c32, %c0_14] : memref<56x64xf32, #tpu.memory_space<vmem>>, vector<16x64xf32>
    tpu.vector_store %arg7[%c32, %c0_14], %11 {strides = array<i32>} : memref<56x64xf32, #tpu.memory_space<vmem>>, vector<16x64xf32>,
    %c7 = arith.constant 7 : index
    %c0_15 = arith.constant 0 : index
    %13 = vector.load %arg7[%c7, %c0_15] : memref<56x64xf32, #tpu.memory_space<vmem>>, vector<16x64xf32>
    %c0_16 = arith.constant 0 : index
    %c0_17 = arith.constant 0 : index
    %14 = vector.load %arg8[%c0_16, %c0_17] : memref<32x384xf32, #tpu.memory_space<vmem>>, vector<16x64xf32>
    tpu.vector_store %arg8[%c0_16, %c0_17], %13 {strides = array<i32>} : memref<32x384xf32, #tpu.memory_space<vmem>>, vector<16x64xf32>,
    %c8_18 = arith.constant 8 : index
    %c0_19 = arith.constant 0 : index
    %15 = vector.load %arg7[%c8_18, %c0_19] : memref<56x64xf32, #tpu.memory_space<vmem>>, vector<16x64xf32>
    %c0_20 = arith.constant 0 : index
    %c128 = arith.constant 128 : index
    %16 = vector.load %arg8[%c0_20, %c128] : memref<32x384xf32, #tpu.memory_space<vmem>>, vector<16x64xf32>
    tpu.vector_store %arg8[%c0_20, %c128], %15 {strides = array<i32>} : memref<32x384xf32, #tpu.memory_space<vmem>>, vector<16x64xf32>,
    %c9 = arith.constant 9 : index
    %c0_21 = arith.constant 0 : index
    %17 = vector.load %arg7[%c9, %c0_21] : memref<56x64xf32, #tpu.memory_space<vmem>>, vector<16x64xf32>
    %c0_22 = arith.constant 0 : index
    %c256 = arith.constant 256 : index
    %18 = vector.load %arg8[%c0_22, %c256] : memref<32x384xf32, #tpu.memory_space<vmem>>, vector<16x64xf32>
    tpu.vector_store %arg8[%c0_22, %c256], %17 {strides = array<i32>} : memref<32x384xf32, #tpu.memory_space<vmem>>, vector<16x64xf32>,
    %c31 = arith.constant 31 : index
    %c0_23 = arith.constant 0 : index
    %19 = vector.load %arg7[%c31, %c0_23] : memref<56x64xf32, #tpu.memory_space<vmem>>, vector<16x64xf32>
    %c16 = arith.constant 16 : index
    %c0_24 = arith.constant 0 : index
    %20 = vector.load %arg8[%c16, %c0_24] : memref<32x384xf32, #tpu.memory_space<vmem>>, vector<16x64xf32>
    tpu.vector_store %arg8[%c16, %c0_24], %19 {strides = array<i32>} : memref<32x384xf32, #tpu.memory_space<vmem>>, vector<16x64xf32>,
    %c32_25 = arith.constant 32 : index
    %c0_26 = arith.constant 0 : index
    %21 = vector.load %arg7[%c32_25, %c0_26] : memref<56x64xf32, #tpu.memory_space<vmem>>, vector<16x64xf32>
    %c16_27 = arith.constant 16 : index
    %c128_28 = arith.constant 128 : index
    %22 = vector.load %arg8[%c16_27, %c128_28] : memref<32x384xf32, #tpu.memory_space<vmem>>, vector<16x64xf32>
    tpu.vector_store %arg8[%c16_27, %c128_28], %21 {strides = array<i32>} : memref<32x384xf32, #tpu.memory_space<vmem>>, vector<16x64xf32>,
    %c33 = arith.constant 33 : index
    %c0_29 = arith.constant 0 : index
    %23 = vector.load %arg7[%c33, %c0_29] : memref<56x64xf32, #tpu.memory_space<vmem>>, vector<16x64xf32>
    %c16_30 = arith.constant 16 : index
    %c256_31 = arith.constant 256 : index
    %24 = vector.load %arg8[%c16_30, %c256_31] : memref<32x384xf32, #tpu.memory_space<vmem>>, vector<16x64xf32>
    tpu.vector_store %arg8[%c16_30, %c256_31], %23 {strides = array<i32>} : memref<32x384xf32, #tpu.memory_space<vmem>>, vector<16x64xf32>,
    %c0_32 = arith.constant 0 : index
    %c0_33 = arith.constant 0 : index
    %25 = vector.load %arg8[%c0_32, %c0_33] : memref<32x384xf32, #tpu.memory_space<vmem>>, vector<32x384xf32>
    %c0_34 = arith.constant 0 : index
    %c0_35 = arith.constant 0 : index
    %26 = vector.load %arg1[%c0_34, %c0_35] : memref<384x64xf32, #tpu.memory_space<vmem>>, vector<384x64xf32>
    %cst_36 = arith.constant dense<0.000000e+00> : vector<32x64xf32>
    %27 = tpu.matmul %25, %26, %cst_36 {dimension_numbers = #tpu.dot_dimension_numbers<[1], [0], [0], [1], [0, 0, 1, 1], [], []>} : vector<32x384xf32>, vector<384x64xf32>, vector<32x64xf32> -> vector<32x64xf32>
    %cst_37 = arith.constant dense<0.000000e+00> : vector<64xf32>
    %28 = vector.multi_reduction <add>, %27, %cst_37 [0] : vector<32x64xf32> to vector<64xf32>
    %29 = vector.shape_cast %28 : vector<64xf32> to vector<1x64xf32>
    %cst_38 = arith.constant dense<0.000000e+00> : vector<1x4xf32>
    %30 = tpu.matmul %29, %4, %cst_38 {dimension_numbers = #tpu.dot_dimension_numbers<[1], [0], [0], [1], [0, 0, 1, 1], [], []>} : vector<1x64xf32>, vector<64x4xf32>, vector<1x4xf32> -> vector<1x4xf32>
    %cst_39 = arith.constant 5.120000e+02 : f32
    %31 = vector.broadcast %cst_39 : f32 to vector<1x4xf32>
    %32 = arith.divf %30, %31 : vector<1x4xf32>
    %cst_40 = arith.constant dense<0.000000e+00> : vector<1x64xf32>
    %33 = tpu.matmul %32, %5, %cst_40 {dimension_numbers = #tpu.dot_dimension_numbers<[1], [0], [0], [1], [0, 0, 1, 1], [], []>} : vector<1x4xf32>, vector<4x64xf32>, vector<1x64xf32> -> vector<1x64xf32>
    %34 = vector.broadcast %33 : vector<1x64xf32> to vector<32x64xf32>
    %35 = arith.subf %27, %34 : vector<32x64xf32>
    %36 = arith.mulf %35, %35 : vector<32x64xf32>
    %cst_41 = arith.constant dense<0.000000e+00> : vector<64xf32>
    %37 = vector.multi_reduction <add>, %36, %cst_41 [0] : vector<32x64xf32> to vector<64xf32>
    %38 = vector.shape_cast %37 : vector<64xf32> to vector<1x64xf32>
    %cst_42 = arith.constant dense<0.000000e+00> : vector<1x4xf32>
    %39 = tpu.matmul %38, %4, %cst_42 {dimension_numbers = #tpu.dot_dimension_numbers<[1], [0], [0], [1], [0, 0, 1, 1], [], []>} : vector<1x64xf32>, vector<64x4xf32>, vector<1x4xf32> -> vector<1x4xf32>
    %cst_43 = arith.constant 5.120000e+02 : f32
    %40 = vector.broadcast %cst_43 : f32 to vector<1x4xf32>
    %41 = arith.divf %39, %40 : vector<1x4xf32>
    %cst_44 = arith.constant 9.99999974E-6 : f32
    %42 = vector.broadcast %cst_44 : f32 to vector<1x4xf32>
    %43 = arith.addf %41, %42 : vector<1x4xf32>
    %44 = math.rsqrt %43 : vector<1x4xf32>
    %45 = arith.mulf %7, %44 : vector<1x4xf32>
    %cst_45 = arith.constant dense<0.000000e+00> : vector<1x64xf32>
    %46 = tpu.matmul %45, %5, %cst_45 {dimension_numbers = #tpu.dot_dimension_numbers<[1], [0], [0], [1], [0, 0, 1, 1], [], []>} : vector<1x4xf32>, vector<4x64xf32>, vector<1x64xf32> -> vector<1x64xf32>
    %cst_46 = arith.constant dense<0.000000e+00> : vector<1x64xf32>
    %47 = tpu.matmul %8, %5, %cst_46 {dimension_numbers = #tpu.dot_dimension_numbers<[1], [0], [0], [1], [0, 0, 1, 1], [], []>} : vector<1x4xf32>, vector<4x64xf32>, vector<1x64xf32> -> vector<1x64xf32>
    %48 = vector.broadcast %46 : vector<1x64xf32> to vector<32x64xf32>
    %49 = arith.mulf %35, %48 : vector<32x64xf32>
    %50 = vector.broadcast %47 : vector<1x64xf32> to vector<32x64xf32>
    %51 = arith.addf %49, %50 : vector<32x64xf32>
    %cst_47 = arith.constant 0.000000e+00 : f32
    %52 = vector.broadcast %cst_47 : f32 to vector<32x64xf32>
    %53 = arith.maximumf %51, %52 : vector<32x64xf32>
    %c2 = arith.constant 2 : index
    %c0_48 = arith.constant 0 : index
    %54 = vector.load %arg5[%c2, %c0_48] : memref<4x4xf32, #tpu.memory_space<vmem>>, vector<1x4xf32>
    %c3 = arith.constant 3 : index
    %c0_49 = arith.constant 0 : index
    %55 = vector.load %arg5[%c3, %c0_49] : memref<4x4xf32, #tpu.memory_space<vmem>>, vector<1x4xf32>
    %56 = vector.extract_strided_slice %53 {offsets = [0, 0], sizes = [16, 64], strides = [1, 1]} : vector<32x64xf32> to vector<16x64xf32>
    %c8_50 = arith.constant 8 : index
    %c0_51 = arith.constant 0 : index
    %57 = vector.load %arg7[%c8_50, %c0_51] : memref<56x64xf32, #tpu.memory_space<vmem>>, vector<16x64xf32>
    tpu.vector_store %arg7[%c8_50, %c0_51], %56 {strides = array<i32>} : memref<56x64xf32, #tpu.memory_space<vmem>>, vector<16x64xf32>,
    %58 = vector.extract_strided_slice %53 {offsets = [16, 0], sizes = [16, 64], strides = [1, 1]} : vector<32x64xf32> to vector<16x64xf32>
    %c32_52 = arith.constant 32 : index
    %c0_53 = arith.constant 0 : index
    %59 = vector.load %arg7[%c32_52, %c0_53] : memref<56x64xf32, #tpu.memory_space<vmem>>, vector<16x64xf32>
    tpu.vector_store %arg7[%c32_52, %c0_53], %58 {strides = array<i32>} : memref<56x64xf32, #tpu.memory_space<vmem>>, vector<16x64xf32>,
    %c7_54 = arith.constant 7 : index
    %c0_55 = arith.constant 0 : index
    %60 = vector.load %arg7[%c7_54, %c0_55] : memref<56x64xf32, #tpu.memory_space<vmem>>, vector<16x64xf32>
    %c0_56 = arith.constant 0 : index
    %c0_57 = arith.constant 0 : index
    %61 = vector.load %arg8[%c0_56, %c0_57] : memref<32x384xf32, #tpu.memory_space<vmem>>, vector<16x64xf32>
    tpu.vector_store %arg8[%c0_56, %c0_57], %60 {strides = array<i32>} : memref<32x384xf32, #tpu.memory_space<vmem>>, vector<16x64xf32>,
    %c8_58 = arith.constant 8 : index
    %c0_59 = arith.constant 0 : index
    %62 = vector.load %arg7[%c8_58, %c0_59] : memref<56x64xf32, #tpu.memory_space<vmem>>, vector<16x64xf32>
    %c0_60 = arith.constant 0 : index
    %c128_61 = arith.constant 128 : index
    %63 = vector.load %arg8[%c0_60, %c128_61] : memref<32x384xf32, #tpu.memory_space<vmem>>, vector<16x64xf32>
    tpu.vector_store %arg8[%c0_60, %c128_61], %62 {strides = array<i32>} : memref<32x384xf32, #tpu.memory_space<vmem>>, vector<16x64xf32>,
    %c9_62 = arith.constant 9 : index
    %c0_63 = arith.constant 0 : index
    %64 = vector.load %arg7[%c9_62, %c0_63] : memref<56x64xf32, #tpu.memory_space<vmem>>, vector<16x64xf32>
    %c0_64 = arith.constant 0 : index
    %c256_65 = arith.constant 256 : index
    %65 = vector.load %arg8[%c0_64, %c256_65] : memref<32x384xf32, #tpu.memory_space<vmem>>, vector<16x64xf32>
    tpu.vector_store %arg8[%c0_64, %c256_65], %64 {strides = array<i32>} : memref<32x384xf32, #tpu.memory_space<vmem>>, vector<16x64xf32>,
    %c31_66 = arith.constant 31 : index
    %c0_67 = arith.constant 0 : index
    %66 = vector.load %arg7[%c31_66, %c0_67] : memref<56x64xf32, #tpu.memory_space<vmem>>, vector<16x64xf32>
    %c16_68 = arith.constant 16 : index
    %c0_69 = arith.constant 0 : index
    %67 = vector.load %arg8[%c16_68, %c0_69] : memref<32x384xf32, #tpu.memory_space<vmem>>, vector<16x64xf32>
    tpu.vector_store %arg8[%c16_68, %c0_69], %66 {strides = array<i32>} : memref<32x384xf32, #tpu.memory_space<vmem>>, vector<16x64xf32>,
    %c32_70 = arith.constant 32 : index
    %c0_71 = arith.constant 0 : index
    %68 = vector.load %arg7[%c32_70, %c0_71] : memref<56x64xf32, #tpu.memory_space<vmem>>, vector<16x64xf32>
    %c16_72 = arith.constant 16 : index
    %c128_73 = arith.constant 128 : index
    %69 = vector.load %arg8[%c16_72, %c128_73] : memref<32x384xf32, #tpu.memory_space<vmem>>, vector<16x64xf32>
    tpu.vector_store %arg8[%c16_72, %c128_73], %68 {strides = array<i32>} : memref<32x384xf32, #tpu.memory_space<vmem>>, vector<16x64xf32>,
    %c33_74 = arith.constant 33 : index
    %c0_75 = arith.constant 0 : index
    %70 = vector.load %arg7[%c33_74, %c0_75] : memref<56x64xf32, #tpu.memory_space<vmem>>, vector<16x64xf32>
    %c16_76 = arith.constant 16 : index
    %c256_77 = arith.constant 256 : index
    %71 = vector.load %arg8[%c16_76, %c256_77] : memref<32x384xf32, #tpu.memory_space<vmem>>, vector<16x64xf32>
    tpu.vector_store %arg8[%c16_76, %c256_77], %70 {strides = array<i32>} : memref<32x384xf32, #tpu.memory_space<vmem>>, vector<16x64xf32>,
    %c0_78 = arith.constant 0 : index
    %c0_79 = arith.constant 0 : index
    %72 = vector.load %arg8[%c0_78, %c0_79] : memref<32x384xf32, #tpu.memory_space<vmem>>, vector<32x384xf32>
    %c0_80 = arith.constant 0 : index
    %c0_81 = arith.constant 0 : index
    %73 = vector.load %arg2[%c0_80, %c0_81] : memref<384x64xf32, #tpu.memory_space<vmem>>, vector<384x64xf32>
    %cst_82 = arith.constant dense<0.000000e+00> : vector<32x64xf32>
    %74 = tpu.matmul %72, %73, %cst_82 {dimension_numbers = #tpu.dot_dimension_numbers<[1], [0], [0], [1], [0, 0, 1, 1], [], []>} : vector<32x384xf32>, vector<384x64xf32>, vector<32x64xf32> -> vector<32x64xf32>
    %cst_83 = arith.constant dense<0.000000e+00> : vector<64xf32>
    %75 = vector.multi_reduction <add>, %74, %cst_83 [0] : vector<32x64xf32> to vector<64xf32>
    %76 = vector.shape_cast %75 : vector<64xf32> to vector<1x64xf32>
    %cst_84 = arith.constant dense<0.000000e+00> : vector<1x4xf32>
    %77 = tpu.matmul %76, %4, %cst_84 {dimension_numbers = #tpu.dot_dimension_numbers<[1], [0], [0], [1], [0, 0, 1, 1], [], []>} : vector<1x64xf32>, vector<64x4xf32>, vector<1x4xf32> -> vector<1x4xf32>
    %cst_85 = arith.constant 5.120000e+02 : f32
    %78 = vector.broadcast %cst_85 : f32 to vector<1x4xf32>
    %79 = arith.divf %77, %78 : vector<1x4xf32>
    %cst_86 = arith.constant dense<0.000000e+00> : vector<1x64xf32>
    %80 = tpu.matmul %79, %5, %cst_86 {dimension_numbers = #tpu.dot_dimension_numbers<[1], [0], [0], [1], [0, 0, 1, 1], [], []>} : vector<1x4xf32>, vector<4x64xf32>, vector<1x64xf32> -> vector<1x64xf32>
    %81 = vector.broadcast %80 : vector<1x64xf32> to vector<32x64xf32>
    %82 = arith.subf %74, %81 : vector<32x64xf32>
    %83 = arith.mulf %82, %82 : vector<32x64xf32>
    %cst_87 = arith.constant dense<0.000000e+00> : vector<64xf32>
    %84 = vector.multi_reduction <add>, %83, %cst_87 [0] : vector<32x64xf32> to vector<64xf32>
    %85 = vector.shape_cast %84 : vector<64xf32> to vector<1x64xf32>
    %cst_88 = arith.constant dense<0.000000e+00> : vector<1x4xf32>
    %86 = tpu.matmul %85, %4, %cst_88 {dimension_numbers = #tpu.dot_dimension_numbers<[1], [0], [0], [1], [0, 0, 1, 1], [], []>} : vector<1x64xf32>, vector<64x4xf32>, vector<1x4xf32> -> vector<1x4xf32>
    %cst_89 = arith.constant 5.120000e+02 : f32
    %87 = vector.broadcast %cst_89 : f32 to vector<1x4xf32>
    %88 = arith.divf %86, %87 : vector<1x4xf32>
    %cst_90 = arith.constant 9.99999974E-6 : f32
    %89 = vector.broadcast %cst_90 : f32 to vector<1x4xf32>
    %90 = arith.addf %88, %89 : vector<1x4xf32>
    %91 = math.rsqrt %90 : vector<1x4xf32>
    %92 = arith.mulf %54, %91 : vector<1x4xf32>
    %cst_91 = arith.constant dense<0.000000e+00> : vector<1x64xf32>
    %93 = tpu.matmul %92, %5, %cst_91 {dimension_numbers = #tpu.dot_dimension_numbers<[1], [0], [0], [1], [0, 0, 1, 1], [], []>} : vector<1x4xf32>, vector<4x64xf32>, vector<1x64xf32> -> vector<1x64xf32>
    %cst_92 = arith.constant dense<0.000000e+00> : vector<1x64xf32>
    %94 = tpu.matmul %55, %5, %cst_92 {dimension_numbers = #tpu.dot_dimension_numbers<[1], [0], [0], [1], [0, 0, 1, 1], [], []>} : vector<1x4xf32>, vector<4x64xf32>, vector<1x64xf32> -> vector<1x64xf32>
    %95 = vector.broadcast %93 : vector<1x64xf32> to vector<32x64xf32>
    %96 = arith.mulf %82, %95 : vector<32x64xf32>
    %97 = vector.broadcast %94 : vector<1x64xf32> to vector<32x64xf32>
    %98 = arith.addf %96, %97 : vector<32x64xf32>
    %cst_93 = arith.constant 0.000000e+00 : f32
    %99 = vector.broadcast %cst_93 : f32 to vector<32x64xf32>
    %100 = arith.maximumf %98, %99 : vector<32x64xf32>
    %c0_94 = arith.constant 0 : index
    %c0_95 = arith.constant 0 : index
    %101 = vector.load %arg6[%c0_94, %c0_95] : memref<32x64xf32, #tpu.memory_space<vmem>>, vector<32x64xf32>
    tpu.vector_store %arg6[%c0_94, %c0_95], %100 {strides = array<i32>} : memref<32x64xf32, #tpu.memory_space<vmem>>, vector<32x64xf32>,
    return
  }
}

</mosaic_0001>

<llo_original>
// kernel: tile.9
$region0: #{tile.9}
  %s0 = inlined_call_operand.vmem [shape: f32[16,4,4], index: 0, kind: input, shape index: {}]
  %s1 = inlined_call_operand.vmem [shape: f32[64,4], index: 1, kind: output, shape index: {}]
  $region1: #{tile.9} parent=0
    #allocation0 [shape = 'u8[4096]{0}', space=vmem, size = 0x1000, scoped, tag = 'scoped mem for output reshape']
    %s2 = smov 3
    %v3 = vld [vmem:[%s0] ss:$16 sm:%s2]
    %s4 = smov 12
    %v5 = vld [vmem:[%s0] ss:$16 sm:%s4]
    %vm6 = vcmask 1043458
    %v7 = vsel %vm6, %v5, %v3
    %vm8 = vcmask 31744
    %9 = vst.msk [vmem:[#allocation0] sm:$0xf] %vm8, %v7
    %s10 = scalar_lea.vmem %s0, 15
    %s11 = smov 3
    %v12 = vld [vmem:[%s10] ss:$16 sm:%s11]
    %s13 = scalar_lea.vmem %s0, 15
    %s14 = smov 12
    %v15 = vld [vmem:[%s13] ss:$16 sm:%s14]
    %vm16 = vcmask 1043458
    %v17 = vsel %vm16, %v15, %v12
    %18 = vrot.lane.b32.xlu0 %v17, 60
    %v19 = vpop.permute.xlu0 %18
    %vm20 = vcmask 523744
    %21 = vst.msk [vmem:[#allocation0] sm:$0xf] %vm20, %v19
    %s22 = scalar_lea.vmem %s0, 14
    %s23 = smov 3
    %v24 = vld [vmem:[%s22] ss:$16 sm:%s23]
    %s25 = scalar_lea.vmem %s0, 14
    %s26 = smov 12
    %v27 = vld [vmem:[%s25] ss:$16 sm:%s26]
    %vm28 = vcmask 1043458
    %v29 = vsel %vm28, %v27, %v24
    %30 = vrot.lane.b32.xlu0 %v29, 56
    %v31 = vpop.permute.xlu0 %30
    %vm32 = vcmask 490944
    %33 = vst.msk [vmem:[#allocation0] sm:$0xf] %vm32, %v31
    %s34 = scalar_lea.vmem %s0, 13
    %s35 = smov 3
    %v36 = vld [vmem:[%s34] ss:$16 sm:%s35]
    %s37 = scalar_lea.vmem %s0, 13
    %s38 = smov 12
    %v39 = vld [vmem:[%s37] ss:$16 sm:%s38]
    %vm40 = vcmask 1043458
    %v41 = vsel %vm40, %v39, %v36
    %42 = vrot.lane.b32.xlu0 %v41, 52
    %v43 = vpop.permute.xlu0 %42
    %vm44 = vcmask 458144
    %45 = vst.msk [vmem:[#allocation0] sm:$0xf] %vm44, %v43
    %s46 = scalar_lea.vmem %s0, 12
    %s47 = smov 3
    %v48 = vld [vmem:[%s46] ss:$16 sm:%s47]
    %s49 = scalar_lea.vmem %s0, 12
    %s50 = smov 12
    %v51 = vld [vmem:[%s49] ss:$16 sm:%s50]
    %vm52 = vcmask 1043458
    %v53 = vsel %vm52, %v51, %v48
    %54 = vrot.lane.b32.xlu0 %v53, 48
    %v55 = vpop.permute.xlu0 %54
    %vm56 = vcmask 425344
    %57 = vst.msk [vmem:[#allocation0] sm:$0xf] %vm56, %v55
    %s58 = scalar_lea.vmem %s0, 11
    %s59 = smov 3
    %v60 = vld [vmem:[%s58] ss:$16 sm:%s59]
    %s61 = scalar_lea.vmem %s0, 11
    %s62 = smov 12
    %v63 = vld [vmem:[%s61] ss:$16 sm:%s62]
    %vm64 = vcmask 1043458
    %v65 = vsel %vm64, %v63, %v60
    %66 = vrot.lane.b32.xlu0 %v65, 44
    %v67 = vpop.permute.xlu0 %66
    %vm68 = vcmask 392544
    %69 = vst.msk [vmem:[#allocation0] sm:$0xf] %vm68, %v67
    %s70 = scalar_lea.vmem %s0, 10
    %s71 = smov 3
    %v72 = vld [vmem:[%s70] ss:$16 sm:%s71]
    %s73 = scalar_lea.vmem %s0, 10
    %s74 = smov 12
    %v75 = vld [vmem:[%s73] ss:$16 sm:%s74]
    %vm76 = vcmask 1043458
    %v77 = vsel %vm76, %v75, %v72
    %78 = vrot.lane.b32.xlu0 %v77, 40
    %v79 = vpop.permute.xlu0 %78
    %vm80 = vcmask 359744
    %81 = vst.msk [vmem:[#allocation0] sm:$0xf] %vm80, %v79
    %s82 = scalar_lea.vmem %s0, 9
    %s83 = smov 3
    %v84 = vld [vmem:[%s82] ss:$16 sm:%s83]
    %s85 = scalar_lea.vmem %s0, 9
    %s86 = smov 12
    %v87 = vld [vmem:[%s85] ss:$16 sm:%s86]
    %vm88 = vcmask 1043458
    %v89 = vsel %vm88, %v87, %v84
    %90 = vrot.lane.b32.xlu0 %v89, 36
    %v91 = vpop.permute.xlu0 %90
    %vm92 = vcmask 326944
    %93 = vst.msk [vmem:[#allocation0] sm:$0xf] %vm92, %v91
    %s94 = scalar_lea.vmem %s0, 8
    %s95 = smov 3
    %v96 = vld [vmem:[%s94] ss:$16 sm:%s95]
    %s97 = scalar_lea.vmem %s0, 8
    %s98 = smov 12
    %v99 = vld [vmem:[%s97] ss:$16 sm:%s98]
    %vm100 = vcmask 1043458
    %v101 = vsel %vm100, %v99, %v96
    %102 = vrot.lane.b32.xlu0 %v101, 32
    %v103 = vpop.permute.xlu0 %102
    %vm104 = vcmask 294144
    %105 = vst.msk [vmem:[#allocation0] sm:$0xf] %vm104, %v103
    %s106 = scalar_lea.vmem %s0, 7
    %s107 = smov 3
    %v108 = vld [vmem:[%s106] ss:$16 sm:%s107]
    %s109 = scalar_lea.vmem %s0, 7
    %s110 = smov 12
    %v111 = vld [vmem:[%s109] ss:$16 sm:%s110]
    %vm112 = vcmask 1043458
    %v113 = vsel %vm112, %v111, %v108
    %114 = vrot.lane.b32.xlu0 %v113, 28
    %v115 = vpop.permute.xlu0 %114
    %vm116 = vcmask 261344
    %117 = vst.msk [vmem:[#allocation0] sm:$0xf] %vm116, %v115
    %s118 = scalar_lea.vmem %s0, 6
    %s119 = smov 3
    %v120 = vld [vmem:[%s118] ss:$16 sm:%s119]
    %s121 = scalar_lea.vmem %s0, 6
    %s122 = smov 12
    %v123 = vld [vmem:[%s121] ss:$16 sm:%s122]
    %vm124 = vcmask 1043458
    %v125 = vsel %vm124, %v123, %v120
    %126 = vrot.lane.b32.xlu0 %v125, 24
    %v127 = vpop.permute.xlu0 %126
    %vm128 = vcmask 228544
    %129 = vst.msk [vmem:[#allocation0] sm:$0xf] %vm128, %v127
    %s130 = scalar_lea.vmem %s0, 5
    %s131 = smov 3
    %v132 = vld [vmem:[%s130] ss:$16 sm:%s131]
    %s133 = scalar_lea.vmem %s0, 5
    %s134 = smov 12
    %v135 = vld [vmem:[%s133] ss:$16 sm:%s134]
    %vm136 = vcmask 1043458
    %v137 = vsel %vm136, %v135, %v132
    %138 = vrot.lane.b32.xlu0 %v137, 20
    %v139 = vpop.permute.xlu0 %138
    %vm140 = vcmask 195744
    %141 = vst.msk [vmem:[#allocation0] sm:$0xf] %vm140, %v139
    %s142 = scalar_lea.vmem %s0, 4
    %s143 = smov 3
    %v144 = vld [vmem:[%s142] ss:$16 sm:%s143]
    %s145 = scalar_lea.vmem %s0, 4
    %s146 = smov 12
    %v147 = vld [vmem:[%s145] ss:$16 sm:%s146]
    %vm148 = vcmask 1043458
    %v149 = vsel %vm148, %v147, %v144
    %150 = vrot.lane.b32.xlu0 %v149, 16
    %v151 = vpop.permute.xlu0 %150
    %vm152 = vcmask 162944
    %153 = vst.msk [vmem:[#allocation0] sm:$0xf] %vm152, %v151
    %s154 = scalar_lea.vmem %s0, 3
    %s155 = smov 3
    %v156 = vld [vmem:[%s154] ss:$16 sm:%s155]
    %s157 = scalar_lea.vmem %s0, 3
    %s158 = smov 12
    %v159 = vld [vmem:[%s157] ss:$16 sm:%s158]
    %vm160 = vcmask 1043458
    %v161 = vsel %vm160, %v159, %v156
    %162 = vrot.lane.b32.xlu0 %v161, 12
    %v163 = vpop.permute.xlu0 %162
    %vm164 = vcmask 130144
    %165 = vst.msk [vmem:[#allocation0] sm:$0xf] %vm164, %v163
    %s166 = scalar_lea.vmem %s0, 2
    %s167 = smov 3
    %v168 = vld [vmem:[%s166] ss:$16 sm:%s167]
    %s169 = scalar_lea.vmem %s0, 2
    %s170 = smov 12
    %v171 = vld [vmem:[%s169] ss:$16 sm:%s170]
    %vm172 = vcmask 1043458
    %v173 = vsel %vm172, %v171, %v168
    %174 = vrot.lane.b32.xlu0 %v173, 8
    %v175 = vpop.permute.xlu0 %174
    %vm176 = vcmask 97344
    %177 = vst.msk [vmem:[#allocation0] sm:$0xf] %vm176, %v175
    %s178 = scalar_lea.vmem %s0, 1
    %s179 = smov 3
    %v180 = vld [vmem:[%s178] ss:$16 sm:%s179]
    %s181 = scalar_lea.vmem %s0, 1
    %s182 = smov 12
    %v183 = vld [vmem:[%s181] ss:$16 sm:%s182]
    %vm184 = vcmask 1043458
    %v185 = vsel %vm184, %v183, %v180
    %186 = vrot.lane.b32.xlu0 %v185, 4
    %v187 = vpop.permute.xlu0 %186
    %vm188 = vcmask 64544
    %189 = vst.msk [vmem:[#allocation0] sm:$0xf] %vm188, %v187
    %s191 = sshllo.u32 0, 4
    %v193 = vld [vmem:[#allocation0] sm:%s191]
    %s194 = sshllo.u32 0, 4
    %195 = vst [vmem:[%s1] sm:%s194] %v193

// kernel: basic_block_forward.1
$region0: #{basic_block_forward.1}
  #allocation0 [shape = 'u32[]', space=smem, size = 0x4, offset = 0x4, fixed_abs, tag = 'smem constant byte address 0x4 - core index']
  #allocation1 [shape = 'u32[144,128]{1,0:T(1,128)}', space=vmem, size = 0x12000, scoped, tag = 'internal scratch']
  #allocation2 [shape = 'f32[56,64]{1,0:T(8,128)}', space=vmem, size = 0x7000, scoped, tag = 'scratch operand']
  #allocation3 [shape = 'f32[32,384]{1,0:T(8,128)}', space=vmem, size = 0xc000, scoped, tag = 'scratch operand']
  %s0 = inlined_call_operand.vmem [shape: f32[32,64], index: 0, kind: input, shape index: {}]
  %s1 = inlined_call_operand.vmem [shape: f32[384,64], index: 1, kind: input, shape index: {}]
  %s2 = inlined_call_operand.vmem [shape: f32[384,64], index: 2, kind: input, shape index: {}]
  %s3 = inlined_call_operand.vmem [shape: f32[64,4], index: 3, kind: input, shape index: {}]
  %s4 = inlined_call_operand.vmem [shape: f32[4,64], index: 4, kind: input, shape index: {}]
  %s5 = inlined_call_operand.vmem [shape: f32[4,4], index: 5, kind: input, shape index: {}]
  %s6 = inlined_call_operand.vmem [shape: f32[32,64], index: 6, kind: output, shape index: {}]
  %s7 = sld [smem:[#allocation0]]
  $region34: #{basic_block_forward.1} parent=0
    _
  %s9 = ssub.s32 1, %s7
  %s10 = scalar_select 0, %s9, %s7
  // Predicated region
  $region2: #{basic_block_forward.1} parent=0 // pred_check
    _
  $region3: #{basic_block_forward.1} parent=0 // pred_check_branch
    %12 = sbr.rel (0) target = $region5
  $region4: #{basic_block_forward.1} parent=0 // pred_region
    _
  $region5: #{basic_block_forward.1} parent=0 // pred_fallthru
    _
  // Predicated region
  $region6: #{basic_block_forward.1} parent=0 // pred_check
    _
  $region7: #{basic_block_forward.1} parent=0 // pred_check_branch
    %14 = sbr.rel (0) target = $region9
  $region8: #{basic_block_forward.1} parent=0 // pred_region
    _
  $region9: #{basic_block_forward.1} parent=0 // pred_fallthru
    _
  // Predicated region
  $region10: #{basic_block_forward.1} parent=0 // pred_check
    _
  $region11: #{basic_block_forward.1} parent=0 // pred_check_branch
    %16 = sbr.rel (0) target = $region13
  $region12: #{basic_block_forward.1} parent=0 // pred_region
    _
  $region13: #{basic_block_forward.1} parent=0 // pred_fallthru
    _
  // Predicated region
  $region14: #{basic_block_forward.1} parent=0 // pred_check
    _
  $region15: #{basic_block_forward.1} parent=0 // pred_check_branch
    %18 = sbr.rel (0) target = $region17
  $region16: #{basic_block_forward.1} parent=0 // pred_region
    _
  $region17: #{basic_block_forward.1} parent=0 // pred_fallthru
    _
  // Predicated region
  $region18: #{basic_block_forward.1} parent=0 // pred_check
    _
  $region19: #{basic_block_forward.1} parent=0 // pred_check_branch
    %20 = sbr.rel (0) target = $region21
  $region20: #{basic_block_forward.1} parent=0 // pred_region
    _
  $region21: #{basic_block_forward.1} parent=0 // pred_fallthru
    _
  // Predicated region
  $region22: #{basic_block_forward.1} parent=0 // pred_check
    _
  $region23: #{basic_block_forward.1} parent=0 // pred_check_branch
    %22 = sbr.rel (0) target = $region25
  $region24: #{basic_block_forward.1} parent=0 // pred_region
    _
  $region25: #{basic_block_forward.1} parent=0 // pred_fallthru
    _
  %vm23 = vcmask 523264
  %24 = vst.msk [vmem:[#allocation2] sm:$0xff] %vm23, 0.0
  %25 = vst.msk [vmem:[#allocation2 + $0x8] sm:$0xff] %vm23, 0.0
  %26 = vst.msk [vmem:[#allocation2 + $0x10] sm:$0xff] %vm23, 0.0
  %27 = vst.msk [vmem:[#allocation2 + $0x18] sm:$0xff] %vm23, 0.0
  %28 = vst.msk [vmem:[#allocation2 + $0x20] sm:$0xff] %vm23, 0.0
  %29 = vst.msk [vmem:[#allocation2 + $0x28] sm:$0xff] %vm23, 0.0
  %30 = vst.msk [vmem:[#allocation2 + $0x30] sm:$0xff] %vm23, 0.0
  %31 = vst [vmem:[#allocation3] sm:$0xff] 0.0
  %32 = vst [vmem:[#allocation3 + $0x8] sm:$0xff] 0.0
  %33 = vst [vmem:[#allocation3 + $0x10] sm:$0xff] 0.0
  %34 = vst [vmem:[#allocation3 + $0x18] sm:$0xff] 0.0
  %35 = vst [vmem:[#allocation3 + $0x20] sm:$0xff] 0.0
  %36 = vst [vmem:[#allocation3 + $0x28] sm:$0xff] 0.0
  %37 = vst [vmem:[#allocation3 + $0x30] sm:$0xff] 0.0
  %38 = vst [vmem:[#allocation3 + $0x38] sm:$0xff] 0.0
  %39 = vst [vmem:[#allocation3 + $0x40] sm:$0xff] 0.0
  %40 = vst [vmem:[#allocation3 + $0x48] sm:$0xff] 0.0
  %41 = vst [vmem:[#allocation3 + $0x50] sm:$0xff] 0.0
  %42 = vst [vmem:[#allocation3 + $0x58] sm:$0xff] 0.0
  %v43 = vld [vmem:[%s3] sm:$0xff]
  %v44 = vld [vmem:[%s3 + $0x8] sm:$0xff]
  %v45 = vld [vmem:[%s3 + $0x10] sm:$0xff]
  %v46 = vld [vmem:[%s3 + $0x18] sm:$0xff]
  %v47 = vld [vmem:[%s3 + $0x20] sm:$0xff]
  %v48 = vld [vmem:[%s3 + $0x28] sm:$0xff]
  %v49 = vld [vmem:[%s3 + $0x30] sm:$0xff]
  %v50 = vld [vmem:[%s3 + $0x38] sm:$0xff]
  %v51 = vld [vmem:[%s4] sm:$0xf]
  %v52 = vld [vmem:[%s0] sm:$0xff]
  %v53 = vld [vmem:[%s0 + $0x8] sm:$0xff]
  %v54 = vld [vmem:[%s0 + $0x10] sm:$0xff]
  %v55 = vld [vmem:[%s0 + $0x18] sm:$0xff]
  %v56 = vld [vmem:[%s5] sm:$0x1]
  %v57 = vld [vmem:[%s5 + $0x1] sm:$0x1]
  %58 = vst.msk [vmem:[#allocation2 + $0x8] sm:$0xff] %vm23, %v52
  %59 = vst.msk [vmem:[#allocation2 + $0x10] sm:$0xff] %vm23, %v53
  %60 = vst.msk [vmem:[#allocation2 + $0x20] sm:$0xff] %vm23, %v54
  %61 = vst.msk [vmem:[#allocation2 + $0x28] sm:$0xff] %vm23, %v55
  %v62 = vld [vmem:[#allocation2 + $0x7] sm:$0xff]
  %v63 = vld [vmem:[#allocation2 + $0xf] sm:$0xff]
  %64 = vst.msk [vmem:[#allocation3] sm:$0xff] %vm23, %v62
  %65 = vst.msk [vmem:[#allocation3 + $0x18] sm:$0xff] %vm23, %v63
  %v66 = vld [vmem:[#allocation2 + $0x8] sm:$0xff]
  %v67 = vld [vmem:[#allocation2 + $0x10] sm:$0xff]
  %68 = vst.msk [vmem:[#allocation3 + $0x8] sm:$0xff] %vm23, %v66
  %69 = vst.msk [vmem:[#allocation3 + $0x20] sm:$0xff] %vm23, %v67
  %v70 = vld [vmem:[#allocation2 + $0x9] sm:$0xff]
  %v71 = vld [vmem:[#allocation2 + $0x11] sm:$0xff]
  %72 = vst.msk [vmem:[#allocation3 + $0x10] sm:$0xff] %vm23, %v70
  %73 = vst.msk [vmem:[#allocation3 + $0x28] sm:$0xff] %vm23, %v71
  %v74 = vld [vmem:[#allocation2 + $0x1f] sm:$0xff]
  %v75 = vld [vmem:[#allocation2 + $0x27] sm:$0xff]
  %76 = vst.msk [vmem:[#allocation3 + $0x30] sm:$0xff] %vm23, %v74
  %77 = vst.msk [vmem:[#allocation3 + $0x48] sm:$0xff] %vm23, %v75
  %v78 = vld [vmem:[#allocation2 + $0x20] sm:$0xff]
  %v79 = vld [vmem:[#allocation2 + $0x28] sm:$0xff]
  %80 = vst.msk [vmem:[#allocation3 + $0x38] sm:$0xff] %vm23, %v78
  %81 = vst.msk [vmem:[#allocation3 + $0x50] sm:$0xff] %vm23, %v79
  %v82 = vld [vmem:[#allocation2 + $0x21] sm:$0xff]
  %v83 = vld [vmem:[#allocation2 + $0x29] sm:$0xff]
  %84 = vst.msk [vmem:[#allocation3 + $0x40] sm:$0xff] %vm23, %v82
  %85 = vst.msk [vmem:[#allocation3 + $0x58] sm:$0xff] %vm23, %v83
  %v86 = vld [vmem:[#allocation3] sm:$0xff]
  %v87 = vld [vmem:[#allocation3 + $0x8] sm:$0xff]
  %v88 = vld [vmem:[#allocation3 + $0x10] sm:$0xff]
  %v89 = vld [vmem:[#allocation3 + $0x18] sm:$0xff]
  %v90 = vld [vmem:[#allocation3 + $0x20] sm:$0xff]
  %v91 = vld [vmem:[#allocation3 + $0x28] sm:$0xff]
  %v92 = vld [vmem:[#allocation3 + $0x30] sm:$0xff]
  %v93 = vld [vmem:[#allocation3 + $0x38] sm:$0xff]
  %v94 = vld [vmem:[#allocation3 + $0x40] sm:$0xff]
  %v95 = vld [vmem:[#allocation3 + $0x48] sm:$0xff]
  %v96 = vld [vmem:[#allocation3 + $0x50] sm:$0xff]
  %v97 = vld [vmem:[#allocation3 + $0x58] sm:$0xff]
  %v98 = vld [vmem:[%s1] sm:$0xff]
  %v99 = vld [vmem:[%s1 + $0x8] sm:$0xff]
  %v100 = vld [vmem:[%s1 + $0x10] sm:$0xff]
  %v101 = vld [vmem:[%s1 + $0x18] sm:$0xff]
  %v102 = vld [vmem:[%s1 + $0x20] sm:$0xff]
  %v103 = vld [vmem:[%s1 + $0x28] sm:$0xff]
  %v104 = vld [vmem:[%s1 + $0x30] sm:$0xff]
  %v105 = vld [vmem:[%s1 + $0x38] sm:$0xff]
  %v106 = vld [vmem:[%s1 + $0x40] sm:$0xff]
  %v107 = vld [vmem:[%s1 + $0x48] sm:$0xff]
  %v108 = vld [vmem:[%s1 + $0x50] sm:$0xff]
  %v109 = vld [vmem:[%s1 + $0x58] sm:$0xff]
  %v110 = vld [vmem:[%s1 + $0x60] sm:$0xff]
  %v111 = vld [vmem:[%s1 + $0x68] sm:$0xff]
  %v112 = vld [vmem:[%s1 + $0x70] sm:$0xff]
  %v113 = vld [vmem:[%s1 + $0x78] sm:$0xff]
  %v114 = vld [vmem:[%s1 + $0x80] sm:$0xff]
  %v115 = vld [vmem:[%s1 + $0x88] sm:$0xff]
  %v116 = vld [vmem:[%s1 + $0x90] sm:$0xff]
  %v117 = vld [vmem:[%s1 + $0x98] sm:$0xff]
  %v118 = vld [vmem:[%s1 + $0xa0] sm:$0xff]
  %v119 = vld [vmem:[%s1 + $0xa8] sm:$0xff]
  %v120 = vld [vmem:[%s1 + $0xb0] sm:$0xff]
  %v121 = vld [vmem:[%s1 + $0xb8] sm:$0xff]
  %v122 = vld [vmem:[%s1 + $0xc0] sm:$0xff]
  %v123 = vld [vmem:[%s1 + $0xc8] sm:$0xff]
  %v124 = vld [vmem:[%s1 + $0xd0] sm:$0xff]
  %v125 = vld [vmem:[%s1 + $0xd8] sm:$0xff]
  %v126 = vld [vmem:[%s1 + $0xe0] sm:$0xff]
  %v127 = vld [vmem:[%s1 + $0xe8] sm:$0xff]
  %v128 = vld [vmem:[%s1 + $0xf0] sm:$0xff]
  %v129 = vld [vmem:[%s1 + $0xf8] sm:$0xff]
  %v130 = vld [vmem:[%s1 + $0x100] sm:$0xff]
  %v131 = vld [vmem:[%s1 + $0x108] sm:$0xff]
  %v132 = vld [vmem:[%s1 + $0x110] sm:$0xff]
  %v133 = vld [vmem:[%s1 + $0x118] sm:$0xff]
  %v134 = vld [vmem:[%s1 + $0x120] sm:$0xff]
  %v135 = vld [vmem:[%s1 + $0x128] sm:$0xff]
  %v136 = vld [vmem:[%s1 + $0x130] sm:$0xff]
  %v137 = vld [vmem:[%s1 + $0x138] sm:$0xff]
  %v138 = vld [vmem:[%s1 + $0x140] sm:$0xff]
  %v139 = vld [vmem:[%s1 + $0x148] sm:$0xff]
  %v140 = vld [vmem:[%s1 + $0x150] sm:$0xff]
  %v141 = vld [vmem:[%s1 + $0x158] sm:$0xff]
  %v142 = vld [vmem:[%s1 + $0x160] sm:$0xff]
  %v143 = vld [vmem:[%s1 + $0x168] sm:$0xff]
  %v144 = vld [vmem:[%s1 + $0x170] sm:$0xff]
  %v145 = vld [vmem:[%s1 + $0x178] sm:$0xff]
  %146 = vmatprep.subr.mxu0 0.0
  %147 = vmatpush1.msra.mxu0 %v98
  %148 = vmatprep.subr.mxu0 0.0
  %149 = vmatpush1.msra.mxu0 %v99
  %150 = vmatprep.subr.mxu0 0.0
  %151 = vmatpush1.msra.mxu0 %v100
  %152 = vmatprep.subr.mxu0 0.0
  %153 = vmatpush1.msra.mxu0 %v101
  %154 = vmatprep.subr.mxu0 0.0
  %155 = vmatpush1.msra.mxu0 %v102
  %156 = vmatprep.subr.mxu0 0.0
  %157 = vmatpush1.msra.mxu0 %v103
  %158 = vmatprep.subr.mxu0 0.0
  %159 = vmatpush1.msra.mxu0 %v104
  %160 = vmatprep.subr.mxu0 0.0
  %161 = vmatpush1.msra.mxu0 %v105
  %162 = vmatprep.subr.mxu0 0.0
  %163 = vmatpush1.msra.mxu0 %v106
  %164 = vmatprep.subr.mxu0 0.0
  %165 = vmatpush1.msra.mxu0 %v107
  %166 = vmatprep.subr.mxu0 0.0
  %167 = vmatpush1.msra.mxu0 %v108
  %168 = vmatprep.subr.mxu0 0.0
  %169 = vmatpush1.msra.mxu0 %v109
  %170 = vmatprep.subr.mxu0 0.0
  %171 = vmatpush1.msra.mxu0 %v110
  %172 = vmatprep.subr.mxu0 0.0
  %173 = vmatpush1.msra.mxu0 %v111
  %174 = vmatprep.subr.mxu0 0.0
  %175 = vmatpush1.msra.mxu0 %v112
  %176 = vmatprep.subr.mxu0 0.0
  %177 = vmatpush1.msra.mxu0 %v113
  %178 = vmatprep.subr.mxu0 0.0
  %179 = vmatpush1.msra.mxu0 %v114
  %180 = vmatprep.subr.mxu0 0.0
  %181 = vmatpush1.msra.mxu0 %v115
  %182 = vmatprep.subr.mxu0 0.0
  %183 = vmatpush1.msra.mxu0 %v116
  %184 = vmatprep.subr.mxu0 0.0
  %185 = vmatpush1.msra.mxu0 %v117
  %186 = vmatprep.subr.mxu0 0.0
  %187 = vmatpush1.msra.mxu0 %v118
  %188 = vmatprep.subr.mxu0 0.0
  %189 = vmatpush1.msra.mxu0 %v119
  %190 = vmatprep.subr.mxu0 0.0
  %191 = vmatpush1.msra.mxu0 %v120
  %192 = vmatprep.subr.mxu0 0.0
  %193 = vmatpush1.msra.mxu0 %v121
  %194 = vmatprep.subr.mxu0 0.0
  %195 = vmatpush1.msra.mxu0 %v122
  %196 = vmatprep.subr.mxu0 0.0
  %197 = vmatpush1.msra.mxu0 %v123
  %198 = vmatprep.subr.mxu0 0.0
  %199 = vmatpush1.msra.mxu0 %v124
  %200 = vmatprep.subr.mxu0 0.0
  %201 = vmatpush1.msra.mxu0 %v125
  %202 = vmatprep.subr.mxu0 0.0
  %203 = vmatpush1.msra.mxu0 %v126
  %204 = vmatprep.subr.mxu0 0.0
  %205 = vmatpush1.msra.mxu0 %v127
  %206 = vmatprep.subr.mxu0 0.0
  %207 = vmatpush1.msra.mxu0 %v128
  %208 = vmatprep.subr.mxu0 0.0
  %209 = vmatpush1.msra.mxu0 %v129
  %210 = vmatprep.mubr.f32.mxu0 %v87
  %211 = vmatmul.mubr.f32.gmra.mrb[0].mxu0 %v86
  %v212 = vpop.f32.mrb[0].mxu0
  %v213 = vadd.f32 0.0, %v212
  %v214 = vpop.f32.mrb[0].mxu0
  %215 = vmatprep.mubr.f32.mxu0 %v90
  %216 = vmatmul.mubr.f32.gmra.mrb[0].mxu0 %v89
  %v217 = vpop.f32.mrb[0].mxu0
  %v218 = vadd.f32 0.0, %v217
  %v219 = vpop.f32.mrb[0].mxu0
  %220 = vmatprep.mubr.f32.mxu0 %v93
  %221 = vmatmul.mubr.f32.gmra.mrb[0].mxu0 %v92
  %v222 = vpop.f32.mrb[0].mxu0
  %v223 = vadd.f32 0.0, %v222
  %v224 = vpop.f32.mrb[0].mxu0
  %225 = vmatprep.mubr.f32.mxu0 %v96
  %226 = vmatmul.mubr.f32.gmra.mrb[0].mxu0 %v95
  %v227 = vpop.f32.mrb[0].mxu0
  %v228 = vadd.f32 0.0, %v227
  %v229 = vpop.f32.mrb[0].mxu0
  %230 = vdwg.mxu0
  %231 = vmatprep.subr.mxu0 0.0
  %232 = vmatpush1.msra.mxu0 %v130
  %233 = vmatprep.subr.mxu0 0.0
  %234 = vmatpush1.msra.mxu0 %v131
  %235 = vmatprep.subr.mxu0 0.0
  %236 = vmatpush1.msra.mxu0 %v132
  %237 = vmatprep.subr.mxu0 0.0
  %238 = vmatpush1.msra.mxu0 %v133
  %239 = vmatprep.subr.mxu0 0.0
  %240 = vmatpush1.msra.mxu0 %v134
  %241 = vmatprep.subr.mxu0 0.0
  %242 = vmatpush1.msra.mxu0 %v135
  %243 = vmatprep.subr.mxu0 0.0
  %244 = vmatpush1.msra.mxu0 %v136
  %245 = vmatprep.subr.mxu0 0.0
  %246 = vmatpush1.msra.mxu0 %v137
  %247 = vmatprep.subr.mxu0 0.0
  %248 = vmatpush1.msra.mxu0 %v138
  %249 = vmatprep.subr.mxu0 0.0
  %250 = vmatpush1.msra.mxu0 %v139
  %251 = vmatprep.subr.mxu0 0.0
  %252 = vmatpush1.msra.mxu0 %v140
  %253 = vmatprep.subr.mxu0 0.0
  %254 = vmatpush1.msra.mxu0 %v141
  %255 = vmatprep.subr.mxu0 0.0
  %256 = vmatpush1.msra.mxu0 %v142
  %257 = vmatprep.subr.mxu0 0.0
  %258 = vmatpush1.msra.mxu0 %v143
  %259 = vmatprep.subr.mxu0 0.0
  %260 = vmatpush1.msra.mxu0 %v144
  %261 = vmatprep.subr.mxu0 0.0
  %262 = vmatpush1.msra.mxu0 %v145
  %263 = vmatprep.subr.mxu0 0.0
  %264 = vmatpush1.msra.mxu0 0.0
  %265 = vmatprep.subr.mxu0 0.0
  %266 = vmatpush1.msra.mxu0 0.0
  %267 = vmatprep.subr.mxu0 0.0
  %268 = vmatpush1.msra.mxu0 0.0
  %269 = vmatprep.subr.mxu0 0.0
  %270 = vmatpush1.msra.mxu0 0.0
  %271 = vmatprep.subr.mxu0 0.0
  %272 = vmatpush1.msra.mxu0 0.0
  %273 = vmatprep.subr.mxu0 0.0
  %274 = vmatpush1.msra.mxu0 0.0
  %275 = vmatprep.subr.mxu0 0.0
  %276 = vmatpush1.msra.mxu0 0.0
  %277 = vmatprep.subr.mxu0 0.0
  %278 = vmatpush1.msra.mxu0 0.0
  %279 = vmatprep.subr.mxu0 0.0
  %280 = vmatpush1.msra.mxu0 0.0
  %281 = vmatprep.subr.mxu0 0.0
  %282 = vmatpush1.msra.mxu0 0.0
  %283 = vmatprep.subr.mxu0 0.0
  %284 = vmatpush1.msra.mxu0 0.0
  %285 = vmatprep.subr.mxu0 0.0
  %286 = vmatpush1.msra.mxu0 0.0
  %287 = vmatprep.subr.mxu0 0.0
  %288 = vmatpush1.msra.mxu0 0.0
  %289 = vmatprep.subr.mxu0 0.0
  %290 = vmatpush1.msra.mxu0 0.0
  %291 = vmatprep.subr.mxu0 0.0
  %292 = vmatpush1.msra.mxu0 0.0
  %293 = vmatprep.subr.mxu0 0.0
  %294 = vmatpush1.msra.mxu0 0.0
  %295 = vmatprep.mubr.f32.mxu0 0.0
  %296 = vmatmul.mubr.f32.gmra.mrb[0].mxu0 %v88
  %v297 = vpop.f32.mrb[0].mxu0
  %v298 = vadd.f32 %v213, %v297
  %v299 = vpop.f32.mrb[0].mxu0
  %300 = vmatprep.mubr.f32.mxu0 0.0
  %301 = vmatmul.mubr.f32.gmra.mrb[0].mxu0 %v91
  %v302 = vpop.f32.mrb[0].mxu0
  %v303 = vadd.f32 %v218, %v302
  %v304 = vpop.f32.mrb[0].mxu0
  %305 = vmatprep.mubr.f32.mxu0 0.0
  %306 = vmatmul.mubr.f32.gmra.mrb[0].mxu0 %v94
  %v307 = vpop.f32.mrb[0].mxu0
  %v308 = vadd.f32 %v223, %v307
  %v309 = vpop.f32.mrb[0].mxu0
  %310 = vmatprep.mubr.f32.mxu0 0.0
  %311 = vmatmul.mubr.f32.gmra.mrb[0].mxu0 %v97
  %v312 = vpop.f32.mrb[0].mxu0
  %v313 = vadd.f32 %v228, %v312
  %v314 = vpop.f32.mrb[0].mxu0
  %315 = vdwg.mxu0
  %v316 = vsel %vm23, %v298, 0.0
  %v317 = vsel %vm23, %v303, 0.0
  %v318 = vadd.f32 %v316, %v317
  %v319 = vsel %vm23, %v308, 0.0
  %v320 = vadd.f32 %v318, %v319
  %v321 = vsel %vm23, %v313, 0.0
  %v322 = vadd.f32 %v320, %v321
  %v323 = vrot.slane %v322, 4
  %v324 = vadd.f32 %v322, %v323
  %v325 = vrot.slane %v324, 2
  %v326 = vadd.f32 %v324, %v325
  %v327 = vrot.slane %v326, 1
  %v328 = vadd.f32 %v326, %v327
  %v330 = vsel %vm23, %v328, 0
  %332 = vmatprep.subr.mxu0 0.0
  %333 = vmatpush1.msra.mxu0 %v43
  %334 = vmatprep.subr.mxu0 0.0
  %335 = vmatpush1.msra.mxu0 %v44
  %336 = vmatprep.subr.mxu0 0.0
  %337 = vmatpush1.msra.mxu0 %v45
  %338 = vmatprep.subr.mxu0 0.0
  %339 = vmatpush1.msra.mxu0 %v46
  %340 = vmatprep.subr.mxu0 0.0
  %341 = vmatpush1.msra.mxu0 %v47
  %342 = vmatprep.subr.mxu0 0.0
  %343 = vmatpush1.msra.mxu0 %v48
  %344 = vmatprep.subr.mxu0 0.0
  %345 = vmatpush1.msra.mxu0 %v49
  %346 = vmatprep.subr.mxu0 0.0
  %347 = vmatpush1.msra.mxu0 %v50
  %348 = vmatprep.subr.mxu0 0.0
  %349 = vmatpush1.msra.mxu0 0.0
  %350 = vmatprep.subr.mxu0 0.0
  %351 = vmatpush1.msra.mxu0 0.0
  %352 = vmatprep.subr.mxu0 0.0
  %353 = vmatpush1.msra.mxu0 0.0
  %354 = vmatprep.subr.mxu0 0.0
  %355 = vmatpush1.msra.mxu0 0.0
  %356 = vmatprep.subr.mxu0 0.0
  %357 = vmatpush1.msra.mxu0 0.0
  %358 = vmatprep.subr.mxu0 0.0
  %359 = vmatpush1.msra.mxu0 0.0
  %360 = vmatprep.subr.mxu0 0.0
  %361 = vmatpush1.msra.mxu0 0.0
  %362 = vmatprep.subr.mxu0 0.0
  %363 = vmatpush1.msra.mxu0 0.0
  %364 = vmatprep.subr.mxu0 0.0
  %365 = vmatpush1.msra.mxu0 0.0
  %366 = vmatprep.subr.mxu0 0.0
  %367 = vmatpush1.msra.mxu0 0.0
  %368 = vmatprep.subr.mxu0 0.0
  %369 = vmatpush1.msra.mxu0 0.0
  %370 = vmatprep.subr.mxu0 0.0
  %371 = vmatpush1.msra.mxu0 0.0
  %372 = vmatprep.subr.mxu0 0.0
  %373 = vmatpush1.msra.mxu0 0.0
  %374 = vmatprep.subr.mxu0 0.0
  %375 = vmatpush1.msra.mxu0 0.0
  %376 = vmatprep.subr.mxu0 0.0
  %377 = vmatpush1.msra.mxu0 0.0
  %378 = vmatprep.subr.mxu0 0.0
  %379 = vmatpush1.msra.mxu0 0.0
  %380 = vmatprep.subr.mxu0 0.0
  %381 = vmatpush1.msra.mxu0 0.0
  %382 = vmatprep.subr.mxu0 0.0
  %383 = vmatpush1.msra.mxu0 0.0
  %384 = vmatprep.subr.mxu0 0.0
  %385 = vmatpush1.msra.mxu0 0.0
  %386 = vmatprep.subr.mxu0 0.0
  %387 = vmatpush1.msra.mxu0 0.0
  %388 = vmatprep.subr.mxu0 0.0
  %389 = vmatpush1.msra.mxu0 0.0
  %390 = vmatprep.subr.mxu0 0.0
  %391 = vmatpush1.msra.mxu0 0.0
  %392 = vmatprep.subr.mxu0 0.0
  %393 = vmatpush1.msra.mxu0 0.0
  %394 = vmatprep.subr.mxu0 0.0
  %395 = vmatpush1.msra.mxu0 0.0
  %396 = vmatprep.mubr.f32.mxu0 0.0
  %397 = vmatmul.mubr.f32.gmra.mrb[0].mxu0 %v330
  %v398 = vpop.f32.mrb[0].mxu0
  %v399 = vadd.f32 0.0, %v398
  %v400 = vpop.f32.mrb[0].mxu0
  %401 = vdwg.mxu0
  %v402 = vrcp.pop 512.0
  %v403 = vmul.f32 %v399, %v402
  %vm404 = vcmask 31744
  %v406 = vsel %vm404, %v403, 0
  %vm408 = vcmask 1043456
  %v410 = vsel %vm408, %v51, 0
  %412 = vmatprep.subr.mxu0 0.0
  %413 = vmatpush1.msra.mxu0 %v410
  %414 = vmatprep.subr.mxu0 0.0
  %415 = vmatpush1.msra.mxu0 0.0
  %416 = vmatprep.subr.mxu0 0.0
  %417 = vmatpush1.msra.mxu0 0.0
  %418 = vmatprep.subr.mxu0 0.0
  %419 = vmatpush1.msra.mxu0 0.0
  %420 = vmatprep.subr.mxu0 0.0
  %421 = vmatpush1.msra.mxu0 0.0
  %422 = vmatprep.subr.mxu0 0.0
  %423 = vmatpush1.msra.mxu0 0.0
  %424 = vmatprep.subr.mxu0 0.0
  %425 = vmatpush1.msra.mxu0 0.0
  %426 = vmatprep.subr.mxu0 0.0
  %427 = vmatpush1.msra.mxu0 0.0
  %428 = vmatprep.subr.mxu0 0.0
  %429 = vmatpush1.msra.mxu0 0.0
  %430 = vmatprep.subr.mxu0 0.0
  %431 = vmatpush1.msra.mxu0 0.0
  %432 = vmatprep.subr.mxu0 0.0
  %433 = vmatpush1.msra.mxu0 0.0
  %434 = vmatprep.subr.mxu0 0.0
  %435 = vmatpush1.msra.mxu0 0.0
  %436 = vmatprep.subr.mxu0 0.0
  %437 = vmatpush1.msra.mxu0 0.0
  %438 = vmatprep.subr.mxu0 0.0
  %439 = vmatpush1.msra.mxu0 0.0
  %440 = vmatprep.subr.mxu0 0.0
  %441 = vmatpush1.msra.mxu0 0.0
  %442 = vmatprep.subr.mxu0 0.0
  %443 = vmatpush1.msra.mxu0 0.0
  %444 = vmatprep.subr.mxu0 0.0
  %445 = vmatpush1.msra.mxu0 0.0
  %446 = vmatprep.subr.mxu0 0.0
  %447 = vmatpush1.msra.mxu0 0.0
  %448 = vmatprep.subr.mxu0 0.0
  %449 = vmatpush1.msra.mxu0 0.0
  %450 = vmatprep.subr.mxu0 0.0
  %451 = vmatpush1.msra.mxu0 0.0
  %452 = vmatprep.subr.mxu0 0.0
  %453 = vmatpush1.msra.mxu0 0.0
  %454 = vmatprep.subr.mxu0 0.0
  %455 = vmatpush1.msra.mxu0 0.0
  %456 = vmatprep.subr.mxu0 0.0
  %457 = vmatpush1.msra.mxu0 0.0
  %458 = vmatprep.subr.mxu0 0.0
  %459 = vmatpush1.msra.mxu0 0.0
  %460 = vmatprep.subr.mxu0 0.0
  %461 = vmatpush1.msra.mxu0 0.0
  %462 = vmatprep.subr.mxu0 0.0
  %463 = vmatpush1.msra.mxu0 0.0
  %464 = vmatprep.subr.mxu0 0.0
  %465 = vmatpush1.msra.mxu0 0.0
  %466 = vmatprep.subr.mxu0 0.0
  %467 = vmatpush1.msra.mxu0 0.0
  %468 = vmatprep.subr.mxu0 0.0
  %469 = vmatpush1.msra.mxu0 0.0
  %470 = vmatprep.subr.mxu0 0.0
  %471 = vmatpush1.msra.mxu0 0.0
  %472 = vmatprep.subr.mxu0 0.0
  %473 = vmatpush1.msra.mxu0 0.0
  %474 = vmatprep.subr.mxu0 0.0
  %475 = vmatpush1.msra.mxu0 0.0
  %476 = vmatprep.mubr.f32.mxu0 0.0
  %477 = vmatmul.mubr.f32.gmra.mrb[0].mxu0 %v406
  %v478 = vpop.f32.mrb[0].mxu0
  %v479 = vadd.f32 0.0, %v478
  %v480 = vpop.f32.mrb[0].mxu0
  %481 = vdwg.mxu0
  %v482 = vlaneseq
  %v483 = vshrl.u32 %v482, 7
  %v484 = vsub.s32 0, %v483
  %v485 = vrot.slane %v479, %v484
  %v486 = vsub.f32 %v298, %v485
  %v487 = vsub.f32 %v303, %v485
  %v488 = vsub.f32 %v308, %v485
  %v489 = vsub.f32 %v313, %v485
  %v490 = vmul.f32 %v486, %v486
  %v491 = vmul.f32 %v487, %v487
  %v492 = vmul.f32 %v488, %v488
  %v493 = vmul.f32 %v489, %v489
  %v494 = vsel %vm23, %v490, 0.0
  %v495 = vsel %vm23, %v491, 0.0
  %v496 = vadd.f32 %v494, %v495
  %v497 = vsel %vm23, %v492, 0.0
  %v498 = vadd.f32 %v496, %v497
  %v499 = vsel %vm23, %v493, 0.0
  %v500 = vadd.f32 %v498, %v499
  %v501 = vrot.slane %v500, 4
  %v502 = vadd.f32 %v500, %v501
  %v503 = vrot.slane %v502, 2
  %v504 = vadd.f32 %v502, %v503
  %v505 = vrot.slane %v504, 1
  %v506 = vadd.f32 %v504, %v505
  %v508 = vsel %vm23, %v506, 0
  %510 = vmatprep.subr.mxu0 0.0
  %511 = vmatpush1.msra.mxu0 %v43
  %512 = vmatprep.subr.mxu0 0.0
  %513 = vmatpush1.msra.mxu0 %v44
  %514 = vmatprep.subr.mxu0 0.0
  %515 = vmatpush1.msra.mxu0 %v45
  %516 = vmatprep.subr.mxu0 0.0
  %517 = vmatpush1.msra.mxu0 %v46
  %518 = vmatprep.subr.mxu0 0.0
  %519 = vmatpush1.msra.mxu0 %v47
  %520 = vmatprep.subr.mxu0 0.0
  %521 = vmatpush1.msra.mxu0 %v48
  %522 = vmatprep.subr.mxu0 0.0
  %523 = vmatpush1.msra.mxu0 %v49
  %524 = vmatprep.subr.mxu0 0.0
  %525 = vmatpush1.msra.mxu0 %v50
  %526 = vmatprep.subr.mxu0 0.0
  %527 = vmatpush1.msra.mxu0 0.0
  %528 = vmatprep.subr.mxu0 0.0
  %529 = vmatpush1.msra.mxu0 0.0
  %530 = vmatprep.subr.mxu0 0.0
  %531 = vmatpush1.msra.mxu0 0.0
  %532 = vmatprep.subr.mxu0 0.0
  %533 = vmatpush1.msra.mxu0 0.0
  %534 = vmatprep.subr.mxu0 0.0
  %535 = vmatpush1.msra.mxu0 0.0
  %536 = vmatprep.subr.mxu0 0.0
  %537 = vmatpush1.msra.mxu0 0.0
  %538 = vmatprep.subr.mxu0 0.0
  %539 = vmatpush1.msra.mxu0 0.0
  %540 = vmatprep.subr.mxu0 0.0
  %541 = vmatpush1.msra.mxu0 0.0
  %542 = vmatprep.subr.mxu0 0.0
  %543 = vmatpush1.msra.mxu0 0.0
  %544 = vmatprep.subr.mxu0 0.0
  %545 = vmatpush1.msra.mxu0 0.0
  %546 = vmatprep.subr.mxu0 0.0
  %547 = vmatpush1.msra.mxu0 0.0
  %548 = vmatprep.subr.mxu0 0.0
  %549 = vmatpush1.msra.mxu0 0.0
  %550 = vmatprep.subr.mxu0 0.0
  %551 = vmatpush1.msra.mxu0 0.0
  %552 = vmatprep.subr.mxu0 0.0
  %553 = vmatpush1.msra.mxu0 0.0
  %554 = vmatprep.subr.mxu0 0.0
  %555 = vmatpush1.msra.mxu0 0.0
  %556 = vmatprep.subr.mxu0 0.0
  %557 = vmatpush1.msra.mxu0 0.0
  %558 = vmatprep.subr.mxu0 0.0
  %559 = vmatpush1.msra.mxu0 0.0
  %560 = vmatprep.subr.mxu0 0.0
  %561 = vmatpush1.msra.mxu0 0.0
  %562 = vmatprep.subr.mxu0 0.0
  %563 = vmatpush1.msra.mxu0 0.0
  %564 = vmatprep.subr.mxu0 0.0
  %565 = vmatpush1.msra.mxu0 0.0
  %566 = vmatprep.subr.mxu0 0.0
  %567 = vmatpush1.msra.mxu0 0.0
  %568 = vmatprep.subr.mxu0 0.0
  %569 = vmatpush1.msra.mxu0 0.0
  %570 = vmatprep.subr.mxu0 0.0
  %571 = vmatpush1.msra.mxu0 0.0
  %572 = vmatprep.subr.mxu0 0.0
  %573 = vmatpush1.msra.mxu0 0.0
  %574 = vmatprep.mubr.f32.mxu0 0.0
  %575 = vmatmul.mubr.f32.gmra.mrb[0].mxu0 %v508
  %v576 = vpop.f32.mrb[0].mxu0
  %v577 = vadd.f32 0.0, %v576
  %v578 = vpop.f32.mrb[0].mxu0
  %579 = vdwg.mxu0
  %v580 = vmul.f32 %v577, %v402
  %v581 = vadd.f32 %v580, 1e-05
  %v582 = vrsqrt.pop %v581
  %v583 = vmul.f32 %v56, %v582
  %v585 = vsel %vm404, %v583, 0
  %587 = vmatprep.subr.mxu0 0.0
  %588 = vmatpush1.msra.mxu0 %v410
  %589 = vmatprep.subr.mxu0 0.0
  %590 = vmatpush1.msra.mxu0 0.0
  %591 = vmatprep.subr.mxu0 0.0
  %592 = vmatpush1.msra.mxu0 0.0
  %593 = vmatprep.subr.mxu0 0.0
  %594 = vmatpush1.msra.mxu0 0.0
  %595 = vmatprep.subr.mxu0 0.0
  %596 = vmatpush1.msra.mxu0 0.0
  %597 = vmatprep.subr.mxu0 0.0
  %598 = vmatpush1.msra.mxu0 0.0
  %599 = vmatprep.subr.mxu0 0.0
  %600 = vmatpush1.msra.mxu0 0.0
  %601 = vmatprep.subr.mxu0 0.0
  %602 = vmatpush1.msra.mxu0 0.0
  %603 = vmatprep.subr.mxu0 0.0
  %604 = vmatpush1.msra.mxu0 0.0
  %605 = vmatprep.subr.mxu0 0.0
  %606 = vmatpush1.msra.mxu0 0.0
  %607 = vmatprep.subr.mxu0 0.0
  %608 = vmatpush1.msra.mxu0 0.0
  %609 = vmatprep.subr.mxu0 0.0
  %610 = vmatpush1.msra.mxu0 0.0
  %611 = vmatprep.subr.mxu0 0.0
  %612 = vmatpush1.msra.mxu0 0.0
  %613 = vmatprep.subr.mxu0 0.0
  %614 = vmatpush1.msra.mxu0 0.0
  %615 = vmatprep.subr.mxu0 0.0
  %616 = vmatpush1.msra.mxu0 0.0
  %617 = vmatprep.subr.mxu0 0.0
  %618 = vmatpush1.msra.mxu0 0.0
  %619 = vmatprep.subr.mxu0 0.0
  %620 = vmatpush1.msra.mxu0 0.0
  %621 = vmatprep.subr.mxu0 0.0
  %622 = vmatpush1.msra.mxu0 0.0
  %623 = vmatprep.subr.mxu0 0.0
  %624 = vmatpush1.msra.mxu0 0.0
  %625 = vmatprep.subr.mxu0 0.0
  %626 = vmatpush1.msra.mxu0 0.0
  %627 = vmatprep.subr.mxu0 0.0
  %628 = vmatpush1.msra.mxu0 0.0
  %629 = vmatprep.subr.mxu0 0.0
  %630 = vmatpush1.msra.mxu0 0.0
  %631 = vmatprep.subr.mxu0 0.0
  %632 = vmatpush1.msra.mxu0 0.0
  %633 = vmatprep.subr.mxu0 0.0
  %634 = vmatpush1.msra.mxu0 0.0
  %635 = vmatprep.subr.mxu0 0.0
  %636 = vmatpush1.msra.mxu0 0.0
  %637 = vmatprep.subr.mxu0 0.0
  %638 = vmatpush1.msra.mxu0 0.0
  %639 = vmatprep.subr.mxu0 0.0
  %640 = vmatpush1.msra.mxu0 0.0
  %641 = vmatprep.subr.mxu0 0.0
  %642 = vmatpush1.msra.mxu0 0.0
  %643 = vmatprep.subr.mxu0 0.0
  %644 = vmatpush1.msra.mxu0 0.0
  %645 = vmatprep.subr.mxu0 0.0
  %646 = vmatpush1.msra.mxu0 0.0
  %647 = vmatprep.subr.mxu0 0.0
  %648 = vmatpush1.msra.mxu0 0.0
  %649 = vmatprep.subr.mxu0 0.0
  %650 = vmatpush1.msra.mxu0 0.0
  %651 = vmatprep.mubr.f32.mxu0 0.0
  %652 = vmatmul.mubr.f32.gmra.mrb[0].mxu0 %v585
  %v653 = vpop.f32.mrb[0].mxu0
  %v654 = vadd.f32 0.0, %v653
  %v655 = vpop.f32.mrb[0].mxu0
  %656 = vdwg.mxu0
  %v658 = vsel %vm404, %v57, 0
  %660 = vmatprep.subr.mxu0 0.0
  %661 = vmatpush1.msra.mxu0 %v410
  %662 = vmatprep.subr.mxu0 0.0
  %663 = vmatpush1.msra.mxu0 0.0
  %664 = vmatprep.subr.mxu0 0.0
  %665 = vmatpush1.msra.mxu0 0.0
  %666 = vmatprep.subr.mxu0 0.0
  %667 = vmatpush1.msra.mxu0 0.0
  %668 = vmatprep.subr.mxu0 0.0
  %669 = vmatpush1.msra.mxu0 0.0
  %670 = vmatprep.subr.mxu0 0.0
  %671 = vmatpush1.msra.mxu0 0.0
  %672 = vmatprep.subr.mxu0 0.0
  %673 = vmatpush1.msra.mxu0 0.0
  %674 = vmatprep.subr.mxu0 0.0
  %675 = vmatpush1.msra.mxu0 0.0
  %676 = vmatprep.subr.mxu0 0.0
  %677 = vmatpush1.msra.mxu0 0.0
  %678 = vmatprep.subr.mxu0 0.0
  %679 = vmatpush1.msra.mxu0 0.0
  %680 = vmatprep.subr.mxu0 0.0
  %681 = vmatpush1.msra.mxu0 0.0
  %682 = vmatprep.subr.mxu0 0.0
  %683 = vmatpush1.msra.mxu0 0.0
  %684 = vmatprep.subr.mxu0 0.0
  %685 = vmatpush1.msra.mxu0 0.0
  %686 = vmatprep.subr.mxu0 0.0
  %687 = vmatpush1.msra.mxu0 0.0
  %688 = vmatprep.subr.mxu0 0.0
  %689 = vmatpush1.msra.mxu0 0.0
  %690 = vmatprep.subr.mxu0 0.0
  %691 = vmatpush1.msra.mxu0 0.0
  %692 = vmatprep.subr.mxu0 0.0
  %693 = vmatpush1.msra.mxu0 0.0
  %694 = vmatprep.subr.mxu0 0.0
  %695 = vmatpush1.msra.mxu0 0.0
  %696 = vmatprep.subr.mxu0 0.0
  %697 = vmatpush1.msra.mxu0 0.0
  %698 = vmatprep.subr.mxu0 0.0
  %699 = vmatpush1.msra.mxu0 0.0
  %700 = vmatprep.subr.mxu0 0.0
  %701 = vmatpush1.msra.mxu0 0.0
  %702 = vmatprep.subr.mxu0 0.0
  %703 = vmatpush1.msra.mxu0 0.0
  %704 = vmatprep.subr.mxu0 0.0
  %705 = vmatpush1.msra.mxu0 0.0
  %706 = vmatprep.subr.mxu0 0.0
  %707 = vmatpush1.msra.mxu0 0.0
  %708 = vmatprep.subr.mxu0 0.0
  %709 = vmatpush1.msra.mxu0 0.0
  %710 = vmatprep.subr.mxu0 0.0
  %711 = vmatpush1.msra.mxu0 0.0
  %712 = vmatprep.subr.mxu0 0.0
  %713 = vmatpush1.msra.mxu0 0.0
  %714 = vmatprep.subr.mxu0 0.0
  %715 = vmatpush1.msra.mxu0 0.0
  %716 = vmatprep.subr.mxu0 0.0
  %717 = vmatpush1.msra.mxu0 0.0
  %718 = vmatprep.subr.mxu0 0.0
  %719 = vmatpush1.msra.mxu0 0.0
  %720 = vmatprep.subr.mxu0 0.0
  %721 = vmatpush1.msra.mxu0 0.0
  %722 = vmatprep.subr.mxu0 0.0
  %723 = vmatpush1.msra.mxu0 0.0
  %724 = vmatprep.mubr.f32.mxu0 0.0
  %725 = vmatmul.mubr.f32.gmra.mrb[0].mxu0 %v658
  %v726 = vpop.f32.mrb[0].mxu0
  %v727 = vadd.f32 0.0, %v726
  %v728 = vpop.f32.mrb[0].mxu0
  %729 = vdwg.mxu0
  %v730 = vlaneseq
  %v731 = vshrl.u32 %v730, 7
  %v732 = vsub.s32 0, %v731
  %v733 = vrot.slane %v654, %v732
  %v734 = vmul.f32 %v486, %v733
  %v735 = vmul.f32 %v487, %v733
  %v736 = vmul.f32 %v488, %v733
  %v737 = vmul.f32 %v489, %v733
  %v738 = vlaneseq
  %v739 = vshrl.u32 %v738, 7
  %v740 = vsub.s32 0, %v739
  %v741 = vrot.slane %v727, %v740
  %v742 = vadd.f32 %v734, %v741
  %v743 = vadd.f32 %v735, %v741
  %v744 = vadd.f32 %v736, %v741
  %v745 = vadd.f32 %v737, %v741
  %v746 = vmax.f32 %v742, 0.0
  %v747 = vmax.f32 %v743, 0.0
  %v748 = vmax.f32 %v744, 0.0
  %v749 = vmax.f32 %v745, 0.0
  %v750 = vld [vmem:[%s5 + $0x2] sm:$0x1]
  %v751 = vld [vmem:[%s5 + $0x3] sm:$0x1]
  %752 = vst.msk [vmem:[#allocation2 + $0x8] sm:$0xff] %vm23, %v746
  %753 = vst.msk [vmem:[#allocation2 + $0x10] sm:$0xff] %vm23, %v747
  %754 = vst.msk [vmem:[#allocation2 + $0x20] sm:$0xff] %vm23, %v748
  %755 = vst.msk [vmem:[#allocation2 + $0x28] sm:$0xff] %vm23, %v749
  %v756 = vld [vmem:[#allocation2 + $0x7] sm:$0xff]
  %v757 = vld [vmem:[#allocation2 + $0xf] sm:$0xff]
  %758 = vst.msk [vmem:[#allocation3] sm:$0xff] %vm23, %v756
  %759 = vst.msk [vmem:[#allocation3 + $0x18] sm:$0xff] %vm23, %v757
  %v760 = vld [vmem:[#allocation2 + $0x8] sm:$0xff]
  %v761 = vld [vmem:[#allocation2 + $0x10] sm:$0xff]
  %762 = vst.msk [vmem:[#allocation3 + $0x8] sm:$0xff] %vm23, %v760
  %763 = vst.msk [vmem:[#allocation3 + $0x20] sm:$0xff] %vm23, %v761
  %v764 = vld [vmem:[#allocation2 + $0x9] sm:$0xff]
  %v765 = vld [vmem:[#allocation2 + $0x11] sm:$0xff]
  %766 = vst.msk [vmem:[#allocation3 + $0x10] sm:$0xff] %vm23, %v764
  %767 = vst.msk [vmem:[#allocation3 + $0x28] sm:$0xff] %vm23, %v765
  %v768 = vld [vmem:[#allocation2 + $0x1f] sm:$0xff]
  %v769 = vld [vmem:[#allocation2 + $0x27] sm:$0xff]
  %770 = vst.msk [vmem:[#allocation3 + $0x30] sm:$0xff] %vm23, %v768
  %771 = vst.msk [vmem:[#allocation3 + $0x48] sm:$0xff] %vm23, %v769
  %v772 = vld [vmem:[#allocation2 + $0x20] sm:$0xff]
  %v773 = vld [vmem:[#allocation2 + $0x28] sm:$0xff]
  %774 = vst.msk [vmem:[#allocation3 + $0x38] sm:$0xff] %vm23, %v772
  %775 = vst.msk [vmem:[#allocation3 + $0x50] sm:$0xff] %vm23, %v773
  %v776 = vld [vmem:[#allocation2 + $0x21] sm:$0xff]
  %v777 = vld [vmem:[#allocation2 + $0x29] sm:$0xff]
  %778 = vst.msk [vmem:[#allocation3 + $0x40] sm:$0xff] %vm23, %v776
  %779 = vst.msk [vmem:[#allocation3 + $0x58] sm:$0xff] %vm23, %v777
  %v780 = vld [vmem:[#allocation3] sm:$0xff]
  %v781 = vld [vmem:[#allocation3 + $0x8] sm:$0xff]
  %v782 = vld [vmem:[#allocation3 + $0x10] sm:$0xff]
  %v783 = vld [vmem:[#allocation3 + $0x18] sm:$0xff]
  %v784 = vld [vmem:[#allocation3 + $0x20] sm:$0xff]
  %v785 = vld [vmem:[#allocation3 + $0x28] sm:$0xff]
  %v786 = vld [vmem:[#allocation3 + $0x30] sm:$0xff]
  %v787 = vld [vmem:[#allocation3 + $0x38] sm:$0xff]
  %v788 = vld [vmem:[#allocation3 + $0x40] sm:$0xff]
  %v789 = vld [vmem:[#allocation3 + $0x48] sm:$0xff]
  %v790 = vld [vmem:[#allocation3 + $0x50] sm:$0xff]
  %v791 = vld [vmem:[#allocation3 + $0x58] sm:$0xff]
  %v792 = vld [vmem:[%s2] sm:$0xff]
  %v793 = vld [vmem:[%s2 + $0x8] sm:$0xff]
  %v794 = vld [vmem:[%s2 + $0x10] sm:$0xff]
  %v795 = vld [vmem:[%s2 + $0x18] sm:$0xff]
  %v796 = vld [vmem:[%s2 + $0x20] sm:$0xff]
  %v797 = vld [vmem:[%s2 + $0x28] sm:$0xff]
  %v798 = vld [vmem:[%s2 + $0x30] sm:$0xff]
  %v799 = vld [vmem:[%s2 + $0x38] sm:$0xff]
  %v800 = vld [vmem:[%s2 + $0x40] sm:$0xff]
  %v801 = vld [vmem:[%s2 + $0x48] sm:$0xff]
  %v802 = vld [vmem:[%s2 + $0x50] sm:$0xff]
  %v803 = vld [vmem:[%s2 + $0x58] sm:$0xff]
  %v804 = vld [vmem:[%s2 + $0x60] sm:$0xff]
  %v805 = vld [vmem:[%s2 + $0x68] sm:$0xff]
  %v806 = vld [vmem:[%s2 + $0x70] sm:$0xff]
  %v807 = vld [vmem:[%s2 + $0x78] sm:$0xff]
  %v808 = vld [vmem:[%s2 + $0x80] sm:$0xff]
  %v809 = vld [vmem:[%s2 + $0x88] sm:$0xff]
  %v810 = vld [vmem:[%s2 + $0x90] sm:$0xff]
  %v811 = vld [vmem:[%s2 + $0x98] sm:$0xff]
  %v812 = vld [vmem:[%s2 + $0xa0] sm:$0xff]
  %v813 = vld [vmem:[%s2 + $0xa8] sm:$0xff]
  %v814 = vld [vmem:[%s2 + $0xb0] sm:$0xff]
  %v815 = vld [vmem:[%s2 + $0xb8] sm:$0xff]
  %v816 = vld [vmem:[%s2 + $0xc0] sm:$0xff]
  %v817 = vld [vmem:[%s2 + $0xc8] sm:$0xff]
  %v818 = vld [vmem:[%s2 + $0xd0] sm:$0xff]
  %v819 = vld [vmem:[%s2 + $0xd8] sm:$0xff]
  %v820 = vld [vmem:[%s2 + $0xe0] sm:$0xff]
  %v821 = vld [vmem:[%s2 + $0xe8] sm:$0xff]
  %v822 = vld [vmem:[%s2 + $0xf0] sm:$0xff]
  %v823 = vld [vmem:[%s2 + $0xf8] sm:$0xff]
  %v824 = vld [vmem:[%s2 + $0x100] sm:$0xff]
  %v825 = vld [vmem:[%s2 + $0x108] sm:$0xff]
  %v826 = vld [vmem:[%s2 + $0x110] sm:$0xff]
  %v827 = vld [vmem:[%s2 + $0x118] sm:$0xff]
  %v828 = vld [vmem:[%s2 + $0x120] sm:$0xff]
  %v829 = vld [vmem:[%s2 + $0x128] sm:$0xff]
  %v830 = vld [vmem:[%s2 + $0x130] sm:$0xff]
  %v831 = vld [vmem:[%s2 + $0x138] sm:$0xff]
  %v832 = vld [vmem:[%s2 + $0x140] sm:$0xff]
  %v833 = vld [vmem:[%s2 + $0x148] sm:$0xff]
  %v834 = vld [vmem:[%s2 + $0x150] sm:$0xff]
  %v835 = vld [vmem:[%s2 + $0x158] sm:$0xff]
  %v836 = vld [vmem:[%s2 + $0x160] sm:$0xff]
  %v837 = vld [vmem:[%s2 + $0x168] sm:$0xff]
  %v838 = vld [vmem:[%s2 + $0x170] sm:$0xff]
  %v839 = vld [vmem:[%s2 + $0x178] sm:$0xff]
  %840 = vmatprep.subr.mxu0 0.0
  %841 = vmatpush1.msra.mxu0 %v792
  %842 = vmatprep.subr.mxu0 0.0
  %843 = vmatpush1.msra.mxu0 %v793
  %844 = vmatprep.subr.mxu0 0.0
  %845 = vmatpush1.msra.mxu0 %v794
  %846 = vmatprep.subr.mxu0 0.0
  %847 = vmatpush1.msra.mxu0 %v795
  %848 = vmatprep.subr.mxu0 0.0
  %849 = vmatpush1.msra.mxu0 %v796
  %850 = vmatprep.subr.mxu0 0.0
  %851 = vmatpush1.msra.mxu0 %v797
  %852 = vmatprep.subr.mxu0 0.0
  %853 = vmatpush1.msra.mxu0 %v798
  %854 = vmatprep.subr.mxu0 0.0
  %855 = vmatpush1.msra.mxu0 %v799
  %856 = vmatprep.subr.mxu0 0.0
  %857 = vmatpush1.msra.mxu0 %v800
  %858 = vmatprep.subr.mxu0 0.0
  %859 = vmatpush1.msra.mxu0 %v801
  %860 = vmatprep.subr.mxu0 0.0
  %861 = vmatpush1.msra.mxu0 %v802
  %862 = vmatprep.subr.mxu0 0.0
  %863 = vmatpush1.msra.mxu0 %v803
  %864 = vmatprep.subr.mxu0 0.0
  %865 = vmatpush1.msra.mxu0 %v804
  %866 = vmatprep.subr.mxu0 0.0
  %867 = vmatpush1.msra.mxu0 %v805
  %868 = vmatprep.subr.mxu0 0.0
  %869 = vmatpush1.msra.mxu0 %v806
  %870 = vmatprep.subr.mxu0 0.0
  %871 = vmatpush1.msra.mxu0 %v807
  %872 = vmatprep.subr.mxu0 0.0
  %873 = vmatpush1.msra.mxu0 %v808
  %874 = vmatprep.subr.mxu0 0.0
  %875 = vmatpush1.msra.mxu0 %v809
  %876 = vmatprep.subr.mxu0 0.0
  %877 = vmatpush1.msra.mxu0 %v810
  %878 = vmatprep.subr.mxu0 0.0
  %879 = vmatpush1.msra.mxu0 %v811
  %880 = vmatprep.subr.mxu0 0.0
  %881 = vmatpush1.msra.mxu0 %v812
  %882 = vmatprep.subr.mxu0 0.0
  %883 = vmatpush1.msra.mxu0 %v813
  %884 = vmatprep.subr.mxu0 0.0
  %885 = vmatpush1.msra.mxu0 %v814
  %886 = vmatprep.subr.mxu0 0.0
  %887 = vmatpush1.msra.mxu0 %v815
  %888 = vmatprep.subr.mxu0 0.0
  %889 = vmatpush1.msra.mxu0 %v816
  %890 = vmatprep.subr.mxu0 0.0
  %891 = vmatpush1.msra.mxu0 %v817
  %892 = vmatprep.subr.mxu0 0.0
  %893 = vmatpush1.msra.mxu0 %v818
  %894 = vmatprep.subr.mxu0 0.0
  %895 = vmatpush1.msra.mxu0 %v819
  %896 = vmatprep.subr.mxu0 0.0
  %897 = vmatpush1.msra.mxu0 %v820
  %898 = vmatprep.subr.mxu0 0.0
  %899 = vmatpush1.msra.mxu0 %v821
  %900 = vmatprep.subr.mxu0 0.0
  %901 = vmatpush1.msra.mxu0 %v822
  %902 = vmatprep.subr.mxu0 0.0
  %903 = vmatpush1.msra.mxu0 %v823
  %904 = vmatprep.mubr.f32.mxu0 %v781
  %905 = vmatmul.mubr.f32.gmra.mrb[0].mxu0 %v780
  %v906 = vpop.f32.mrb[0].mxu0
  %v907 = vadd.f32 0.0, %v906
  %v908 = vpop.f32.mrb[0].mxu0
  %909 = vmatprep.mubr.f32.mxu0 %v784
  %910 = vmatmul.mubr.f32.gmra.mrb[0].mxu0 %v783
  %v911 = vpop.f32.mrb[0].mxu0
  %v912 = vadd.f32 0.0, %v911
  %v913 = vpop.f32.mrb[0].mxu0
  %914 = vmatprep.mubr.f32.mxu0 %v787
  %915 = vmatmul.mubr.f32.gmra.mrb[0].mxu0 %v786
  %v916 = vpop.f32.mrb[0].mxu0
  %v917 = vadd.f32 0.0, %v916
  %v918 = vpop.f32.mrb[0].mxu0
  %919 = vmatprep.mubr.f32.mxu0 %v790
  %920 = vmatmul.mubr.f32.gmra.mrb[0].mxu0 %v789
  %v921 = vpop.f32.mrb[0].mxu0
  %v922 = vadd.f32 0.0, %v921
  %v923 = vpop.f32.mrb[0].mxu0
  %924 = vdwg.mxu0
  %925 = vmatprep.subr.mxu0 0.0
  %926 = vmatpush1.msra.mxu0 %v824
  %927 = vmatprep.subr.mxu0 0.0
  %928 = vmatpush1.msra.mxu0 %v825
  %929 = vmatprep.subr.mxu0 0.0
  %930 = vmatpush1.msra.mxu0 %v826
  %931 = vmatprep.subr.mxu0 0.0
  %932 = vmatpush1.msra.mxu0 %v827
  %933 = vmatprep.subr.mxu0 0.0
  %934 = vmatpush1.msra.mxu0 %v828
  %935 = vmatprep.subr.mxu0 0.0
  %936 = vmatpush1.msra.mxu0 %v829
  %937 = vmatprep.subr.mxu0 0.0
  %938 = vmatpush1.msra.mxu0 %v830
  %939 = vmatprep.subr.mxu0 0.0
  %940 = vmatpush1.msra.mxu0 %v831
  %941 = vmatprep.subr.mxu0 0.0
  %942 = vmatpush1.msra.mxu0 %v832
  %943 = vmatprep.subr.mxu0 0.0
  %944 = vmatpush1.msra.mxu0 %v833
  %945 = vmatprep.subr.mxu0 0.0
  %946 = vmatpush1.msra.mxu0 %v834
  %947 = vmatprep.subr.mxu0 0.0
  %948 = vmatpush1.msra.mxu0 %v835
  %949 = vmatprep.subr.mxu0 0.0
  %950 = vmatpush1.msra.mxu0 %v836
  %951 = vmatprep.subr.mxu0 0.0
  %952 = vmatpush1.msra.mxu0 %v837
  %953 = vmatprep.subr.mxu0 0.0
  %954 = vmatpush1.msra.mxu0 %v838
  %955 = vmatprep.subr.mxu0 0.0
  %956 = vmatpush1.msra.mxu0 %v839
  %957 = vmatprep.subr.mxu0 0.0
  %958 = vmatpush1.msra.mxu0 0.0
  %959 = vmatprep.subr.mxu0 0.0
  %960 = vmatpush1.msra.mxu0 0.0
  %961 = vmatprep.subr.mxu0 0.0
  %962 = vmatpush1.msra.mxu0 0.0
  %963 = vmatprep.subr.mxu0 0.0
  %964 = vmatpush1.msra.mxu0 0.0
  %965 = vmatprep.subr.mxu0 0.0
  %966 = vmatpush1.msra.mxu0 0.0
  %967 = vmatprep.subr.mxu0 0.0
  %968 = vmatpush1.msra.mxu0 0.0
  %969 = vmatprep.subr.mxu0 0.0
  %970 = vmatpush1.msra.mxu0 0.0
  %971 = vmatprep.subr.mxu0 0.0
  %972 = vmatpush1.msra.mxu0 0.0
  %973 = vmatprep.subr.mxu0 0.0
  %974 = vmatpush1.msra.mxu0 0.0
  %975 = vmatprep.subr.mxu0 0.0
  %976 = vmatpush1.msra.mxu0 0.0
  %977 = vmatprep.subr.mxu0 0.0
  %978 = vmatpush1.msra.mxu0 0.0
  %979 = vmatprep.subr.mxu0 0.0
  %980 = vmatpush1.msra.mxu0 0.0
  %981 = vmatprep.subr.mxu0 0.0
  %982 = vmatpush1.msra.mxu0 0.0
  %983 = vmatprep.subr.mxu0 0.0
  %984 = vmatpush1.msra.mxu0 0.0
  %985 = vmatprep.subr.mxu0 0.0
  %986 = vmatpush1.msra.mxu0 0.0
  %987 = vmatprep.subr.mxu0 0.0
  %988 = vmatpush1.msra.mxu0 0.0
  %989 = vmatprep.mubr.f32.mxu0 0.0
  %990 = vmatmul.mubr.f32.gmra.mrb[0].mxu0 %v782
  %v991 = vpop.f32.mrb[0].mxu0
  %v992 = vadd.f32 %v907, %v991
  %v993 = vpop.f32.mrb[0].mxu0
  %994 = vmatprep.mubr.f32.mxu0 0.0
  %995 = vmatmul.mubr.f32.gmra.mrb[0].mxu0 %v785
  %v996 = vpop.f32.mrb[0].mxu0
  %v997 = vadd.f32 %v912, %v996
  %v998 = vpop.f32.mrb[0].mxu0
  %999 = vmatprep.mubr.f32.mxu0 0.0
  %1000 = vmatmul.mubr.f32.gmra.mrb[0].mxu0 %v788
  %v1001 = vpop.f32.mrb[0].mxu0
  %v1002 = vadd.f32 %v917, %v1001
  %v1003 = vpop.f32.mrb[0].mxu0
  %1004 = vmatprep.mubr.f32.mxu0 0.0
  %1005 = vmatmul.mubr.f32.gmra.mrb[0].mxu0 %v791
  %v1006 = vpop.f32.mrb[0].mxu0
  %v1007 = vadd.f32 %v922, %v1006
  %v1008 = vpop.f32.mrb[0].mxu0
  %1009 = vdwg.mxu0
  %v1010 = vsel %vm23, %v992, 0.0
  %v1011 = vsel %vm23, %v997, 0.0
  %v1012 = vadd.f32 %v1010, %v1011
  %v1013 = vsel %vm23, %v1002, 0.0
  %v1014 = vadd.f32 %v1012, %v1013
  %v1015 = vsel %vm23, %v1007, 0.0
  %v1016 = vadd.f32 %v1014, %v1015
  %v1017 = vrot.slane %v1016, 4
  %v1018 = vadd.f32 %v1016, %v1017
  %v1019 = vrot.slane %v1018, 2
  %v1020 = vadd.f32 %v1018, %v1019
  %v1021 = vrot.slane %v1020, 1
  %v1022 = vadd.f32 %v1020, %v1021
  %v1024 = vsel %vm23, %v1022, 0
  %1026 = vmatprep.subr.mxu0 0.0
  %1027 = vmatpush1.msra.mxu0 %v43
  %1028 = vmatprep.subr.mxu0 0.0
  %1029 = vmatpush1.msra.mxu0 %v44
  %1030 = vmatprep.subr.mxu0 0.0
  %1031 = vmatpush1.msra.mxu0 %v45
  %1032 = vmatprep.subr.mxu0 0.0
  %1033 = vmatpush1.msra.mxu0 %v46
  %1034 = vmatprep.subr.mxu0 0.0
  %1035 = vmatpush1.msra.mxu0 %v47
  %1036 = vmatprep.subr.mxu0 0.0
  %1037 = vmatpush1.msra.mxu0 %v48
  %1038 = vmatprep.subr.mxu0 0.0
  %1039 = vmatpush1.msra.mxu0 %v49
  %1040 = vmatprep.subr.mxu0 0.0
  %1041 = vmatpush1.msra.mxu0 %v50
  %1042 = vmatprep.subr.mxu0 0.0
  %1043 = vmatpush1.msra.mxu0 0.0
  %1044 = vmatprep.subr.mxu0 0.0
  %1045 = vmatpush1.msra.mxu0 0.0
  %1046 = vmatprep.subr.mxu0 0.0
  %1047 = vmatpush1.msra.mxu0 0.0
  %1048 = vmatprep.subr.mxu0 0.0
  %1049 = vmatpush1.msra.mxu0 0.0
  %1050 = vmatprep.subr.mxu0 0.0
  %1051 = vmatpush1.msra.mxu0 0.0
  %1052 = vmatprep.subr.mxu0 0.0
  %1053 = vmatpush1.msra.mxu0 0.0
  %1054 = vmatprep.subr.mxu0 0.0
  %1055 = vmatpush1.msra.mxu0 0.0
  %1056 = vmatprep.subr.mxu0 0.0
  %1057 = vmatpush1.msra.mxu0 0.0
  %1058 = vmatprep.subr.mxu0 0.0
  %1059 = vmatpush1.msra.mxu0 0.0
  %1060 = vmatprep.subr.mxu0 0.0
  %1061 = vmatpush1.msra.mxu0 0.0
  %1062 = vmatprep.subr.mxu0 0.0
  %1063 = vmatpush1.msra.mxu0 0.0
  %1064 = vmatprep.subr.mxu0 0.0
  %1065 = vmatpush1.msra.mxu0 0.0
  %1066 = vmatprep.subr.mxu0 0.0
  %1067 = vmatpush1.msra.mxu0 0.0
  %1068 = vmatprep.subr.mxu0 0.0
  %1069 = vmatpush1.msra.mxu0 0.0
  %1070 = vmatprep.subr.mxu0 0.0
  %1071 = vmatpush1.msra.mxu0 0.0
  %1072 = vmatprep.subr.mxu0 0.0
  %1073 = vmatpush1.msra.mxu0 0.0
  %1074 = vmatprep.subr.mxu0 0.0
  %1075 = vmatpush1.msra.mxu0 0.0
  %1076 = vmatprep.subr.mxu0 0.0
  %1077 = vmatpush1.msra.mxu0 0.0
  %1078 = vmatprep.subr.mxu0 0.0
  %1079 = vmatpush1.msra.mxu0 0.0
  %1080 = vmatprep.subr.mxu0 0.0
  %1081 = vmatpush1.msra.mxu0 0.0
  %1082 = vmatprep.subr.mxu0 0.0
  %1083 = vmatpush1.msra.mxu0 0.0
  %1084 = vmatprep.subr.mxu0 0.0
  %1085 = vmatpush1.msra.mxu0 0.0
  %1086 = vmatprep.subr.mxu0 0.0
  %1087 = vmatpush1.msra.mxu0 0.0
  %1088 = vmatprep.subr.mxu0 0.0
  %1089 = vmatpush1.msra.mxu0 0.0
  %1090 = vmatprep.mubr.f32.mxu0 0.0
  %1091 = vmatmul.mubr.f32.gmra.mrb[0].mxu0 %v1024
  %v1092 = vpop.f32.mrb[0].mxu0
  %v1093 = vadd.f32 0.0, %v1092
  %v1094 = vpop.f32.mrb[0].mxu0
  %1095 = vdwg.mxu0
  %v1096 = vmul.f32 %v1093, %v402
  %v1098 = vsel %vm404, %v1096, 0
  %1100 = vmatprep.subr.mxu0 0.0
  %1101 = vmatpush1.msra.mxu0 %v410
  %1102 = vmatprep.subr.mxu0 0.0
  %1103 = vmatpush1.msra.mxu0 0.0
  %1104 = vmatprep.subr.mxu0 0.0
  %1105 = vmatpush1.msra.mxu0 0.0
  %1106 = vmatprep.subr.mxu0 0.0
  %1107 = vmatpush1.msra.mxu0 0.0
  %1108 = vmatprep.subr.mxu0 0.0
  %1109 = vmatpush1.msra.mxu0 0.0
  %1110 = vmatprep.subr.mxu0 0.0
  %1111 = vmatpush1.msra.mxu0 0.0
  %1112 = vmatprep.subr.mxu0 0.0
  %1113 = vmatpush1.msra.mxu0 0.0
  %1114 = vmatprep.subr.mxu0 0.0
  %1115 = vmatpush1.msra.mxu0 0.0
  %1116 = vmatprep.subr.mxu0 0.0
  %1117 = vmatpush1.msra.mxu0 0.0
  %1118 = vmatprep.subr.mxu0 0.0
  %1119 = vmatpush1.msra.mxu0 0.0
  %1120 = vmatprep.subr.mxu0 0.0
  %1121 = vmatpush1.msra.mxu0 0.0
  %1122 = vmatprep.subr.mxu0 0.0
  %1123 = vmatpush1.msra.mxu0 0.0
  %1124 = vmatprep.subr.mxu0 0.0
  %1125 = vmatpush1.msra.mxu0 0.0
  %1126 = vmatprep.subr.mxu0 0.0
  %1127 = vmatpush1.msra.mxu0 0.0
  %1128 = vmatprep.subr.mxu0 0.0
  %1129 = vmatpush1.msra.mxu0 0.0
  %1130 = vmatprep.subr.mxu0 0.0
  %1131 = vmatpush1.msra.mxu0 0.0
  %1132 = vmatprep.subr.mxu0 0.0
  %1133 = vmatpush1.msra.mxu0 0.0
  %1134 = vmatprep.subr.mxu0 0.0
  %1135 = vmatpush1.msra.mxu0 0.0
  %1136 = vmatprep.subr.mxu0 0.0
  %1137 = vmatpush1.msra.mxu0 0.0
  %1138 = vmatprep.subr.mxu0 0.0
  %1139 = vmatpush1.msra.mxu0 0.0
  %1140 = vmatprep.subr.mxu0 0.0
  %1141 = vmatpush1.msra.mxu0 0.0
  %1142 = vmatprep.subr.mxu0 0.0
  %1143 = vmatpush1.msra.mxu0 0.0
  %1144 = vmatprep.subr.mxu0 0.0
  %1145 = vmatpush1.msra.mxu0 0.0
  %1146 = vmatprep.subr.mxu0 0.0
  %1147 = vmatpush1.msra.mxu0 0.0
  %1148 = vmatprep.subr.mxu0 0.0
  %1149 = vmatpush1.msra.mxu0 0.0
  %1150 = vmatprep.subr.mxu0 0.0
  %1151 = vmatpush1.msra.mxu0 0.0
  %1152 = vmatprep.subr.mxu0 0.0
  %1153 = vmatpush1.msra.mxu0 0.0
  %1154 = vmatprep.subr.mxu0 0.0
  %1155 = vmatpush1.msra.mxu0 0.0
  %1156 = vmatprep.subr.mxu0 0.0
  %1157 = vmatpush1.msra.mxu0 0.0
  %1158 = vmatprep.subr.mxu0 0.0
  %1159 = vmatpush1.msra.mxu0 0.0
  %1160 = vmatprep.subr.mxu0 0.0
  %1161 = vmatpush1.msra.mxu0 0.0
  %1162 = vmatprep.subr.mxu0 0.0
  %1163 = vmatpush1.msra.mxu0 0.0
  %1164 = vmatprep.mubr.f32.mxu0 0.0
  %1165 = vmatmul.mubr.f32.gmra.mrb[0].mxu0 %v1098
  %v1166 = vpop.f32.mrb[0].mxu0
  %v1167 = vadd.f32 0.0, %v1166
  %v1168 = vpop.f32.mrb[0].mxu0
  %1169 = vdwg.mxu0
  %v1170 = vlaneseq
  %v1171 = vshrl.u32 %v1170, 7
  %v1172 = vsub.s32 0, %v1171
  %v1173 = vrot.slane %v1167, %v1172
  %v1174 = vsub.f32 %v992, %v1173
  %v1175 = vsub.f32 %v997, %v1173
  %v1176 = vsub.f32 %v1002, %v1173
  %v1177 = vsub.f32 %v1007, %v1173
  %v1178 = vmul.f32 %v1174, %v1174
  %v1179 = vmul.f32 %v1175, %v1175
  %v1180 = vmul.f32 %v1176, %v1176
  %v1181 = vmul.f32 %v1177, %v1177
  %v1182 = vsel %vm23, %v1178, 0.0
  %v1183 = vsel %vm23, %v1179, 0.0
  %v1184 = vadd.f32 %v1182, %v1183
  %v1185 = vsel %vm23, %v1180, 0.0
  %v1186 = vadd.f32 %v1184, %v1185
  %v1187 = vsel %vm23, %v1181, 0.0
  %v1188 = vadd.f32 %v1186, %v1187
  %v1189 = vrot.slane %v1188, 4
  %v1190 = vadd.f32 %v1188, %v1189
  %v1191 = vrot.slane %v1190, 2
  %v1192 = vadd.f32 %v1190, %v1191
  %v1193 = vrot.slane %v1192, 1
  %v1194 = vadd.f32 %v1192, %v1193
  %v1196 = vsel %vm23, %v1194, 0
  %1198 = vmatprep.subr.mxu0 0.0
  %1199 = vmatpush1.msra.mxu0 %v43
  %1200 = vmatprep.subr.mxu0 0.0
  %1201 = vmatpush1.msra.mxu0 %v44
  %1202 = vmatprep.subr.mxu0 0.0
  %1203 = vmatpush1.msra.mxu0 %v45
  %1204 = vmatprep.subr.mxu0 0.0
  %1205 = vmatpush1.msra.mxu0 %v46
  %1206 = vmatprep.subr.mxu0 0.0
  %1207 = vmatpush1.msra.mxu0 %v47
  %1208 = vmatprep.subr.mxu0 0.0
  %1209 = vmatpush1.msra.mxu0 %v48
  %1210 = vmatprep.subr.mxu0 0.0
  %1211 = vmatpush1.msra.mxu0 %v49
  %1212 = vmatprep.subr.mxu0 0.0
  %1213 = vmatpush1.msra.mxu0 %v50
  %1214 = vmatprep.subr.mxu0 0.0
  %1215 = vmatpush1.msra.mxu0 0.0
  %1216 = vmatprep.subr.mxu0 0.0
  %1217 = vmatpush1.msra.mxu0 0.0
  %1218 = vmatprep.subr.mxu0 0.0
  %1219 = vmatpush1.msra.mxu0 0.0
  %1220 = vmatprep.subr.mxu0 0.0
  %1221 = vmatpush1.msra.mxu0 0.0
  %1222 = vmatprep.subr.mxu0 0.0
  %1223 = vmatpush1.msra.mxu0 0.0
  %1224 = vmatprep.subr.mxu0 0.0
  %1225 = vmatpush1.msra.mxu0 0.0
  %1226 = vmatprep.subr.mxu0 0.0
  %1227 = vmatpush1.msra.mxu0 0.0
  %1228 = vmatprep.subr.mxu0 0.0
  %1229 = vmatpush1.msra.mxu0 0.0
  %1230 = vmatprep.subr.mxu0 0.0
  %1231 = vmatpush1.msra.mxu0 0.0
  %1232 = vmatprep.subr.mxu0 0.0
  %1233 = vmatpush1.msra.mxu0 0.0
  %1234 = vmatprep.subr.mxu0 0.0
  %1235 = vmatpush1.msra.mxu0 0.0
  %1236 = vmatprep.subr.mxu0 0.0
  %1237 = vmatpush1.msra.mxu0 0.0
  %1238 = vmatprep.subr.mxu0 0.0
  %1239 = vmatpush1.msra.mxu0 0.0
  %1240 = vmatprep.subr.mxu0 0.0
  %1241 = vmatpush1.msra.mxu0 0.0
  %1242 = vmatprep.subr.mxu0 0.0
  %1243 = vmatpush1.msra.mxu0 0.0
  %1244 = vmatprep.subr.mxu0 0.0
  %1245 = vmatpush1.msra.mxu0 0.0
  %1246 = vmatprep.subr.mxu0 0.0
  %1247 = vmatpush1.msra.mxu0 0.0
  %1248 = vmatprep.subr.mxu0 0.0
  %1249 = vmatpush1.msra.mxu0 0.0
  %1250 = vmatprep.subr.mxu0 0.0
  %1251 = vmatpush1.msra.mxu0 0.0
  %1252 = vmatprep.subr.mxu0 0.0
  %1253 = vmatpush1.msra.mxu0 0.0
  %1254 = vmatprep.subr.mxu0 0.0
  %1255 = vmatpush1.msra.mxu0 0.0
  %1256 = vmatprep.subr.mxu0 0.0
  %1257 = vmatpush1.msra.mxu0 0.0
  %1258 = vmatprep.subr.mxu0 0.0
  %1259 = vmatpush1.msra.mxu0 0.0
  %1260 = vmatprep.subr.mxu0 0.0
  %1261 = vmatpush1.msra.mxu0 0.0
  %1262 = vmatprep.mubr.f32.mxu0 0.0
  %1263 = vmatmul.mubr.f32.gmra.mrb[0].mxu0 %v1196
  %v1264 = vpop.f32.mrb[0].mxu0
  %v1265 = vadd.f32 0.0, %v1264
  %v1266 = vpop.f32.mrb[0].mxu0
  %1267 = vdwg.mxu0
  %v1268 = vmul.f32 %v1265, %v402
  %v1269 = vadd.f32 %v1268, 1e-05
  %v1270 = vrsqrt.pop %v1269
  %v1271 = vmul.f32 %v750, %v1270
  %v1273 = vsel %vm404, %v1271, 0
  %1275 = vmatprep.subr.mxu0 0.0
  %1276 = vmatpush1.msra.mxu0 %v410
  %1277 = vmatprep.subr.mxu0 0.0
  %1278 = vmatpush1.msra.mxu0 0.0
  %1279 = vmatprep.subr.mxu0 0.0
  %1280 = vmatpush1.msra.mxu0 0.0
  %1281 = vmatprep.subr.mxu0 0.0
  %1282 = vmatpush1.msra.mxu0 0.0
  %1283 = vmatprep.subr.mxu0 0.0
  %1284 = vmatpush1.msra.mxu0 0.0
  %1285 = vmatprep.subr.mxu0 0.0
  %1286 = vmatpush1.msra.mxu0 0.0
  %1287 = vmatprep.subr.mxu0 0.0
  %1288 = vmatpush1.msra.mxu0 0.0
  %1289 = vmatprep.subr.mxu0 0.0
  %1290 = vmatpush1.msra.mxu0 0.0
  %1291 = vmatprep.subr.mxu0 0.0
  %1292 = vmatpush1.msra.mxu0 0.0
  %1293 = vmatprep.subr.mxu0 0.0
  %1294 = vmatpush1.msra.mxu0 0.0
  %1295 = vmatprep.subr.mxu0 0.0
  %1296 = vmatpush1.msra.mxu0 0.0
  %1297 = vmatprep.subr.mxu0 0.0
  %1298 = vmatpush1.msra.mxu0 0.0
  %1299 = vmatprep.subr.mxu0 0.0
  %1300 = vmatpush1.msra.mxu0 0.0
  %1301 = vmatprep.subr.mxu0 0.0
  %1302 = vmatpush1.msra.mxu0 0.0
  %1303 = vmatprep.subr.mxu0 0.0
  %1304 = vmatpush1.msra.mxu0 0.0
  %1305 = vmatprep.subr.mxu0 0.0
  %1306 = vmatpush1.msra.mxu0 0.0
  %1307 = vmatprep.subr.mxu0 0.0
  %1308 = vmatpush1.msra.mxu0 0.0
  %1309 = vmatprep.subr.mxu0 0.0
  %1310 = vmatpush1.msra.mxu0 0.0
  %1311 = vmatprep.subr.mxu0 0.0
  %1312 = vmatpush1.msra.mxu0 0.0
  %1313 = vmatprep.subr.mxu0 0.0
  %1314 = vmatpush1.msra.mxu0 0.0
  %1315 = vmatprep.subr.mxu0 0.0
  %1316 = vmatpush1.msra.mxu0 0.0
  %1317 = vmatprep.subr.mxu0 0.0
  %1318 = vmatpush1.msra.mxu0 0.0
  %1319 = vmatprep.subr.mxu0 0.0
  %1320 = vmatpush1.msra.mxu0 0.0
  %1321 = vmatprep.subr.mxu0 0.0
  %1322 = vmatpush1.msra.mxu0 0.0
  %1323 = vmatprep.subr.mxu0 0.0
  %1324 = vmatpush1.msra.mxu0 0.0
  %1325 = vmatprep.subr.mxu0 0.0
  %1326 = vmatpush1.msra.mxu0 0.0
  %1327 = vmatprep.subr.mxu0 0.0
  %1328 = vmatpush1.msra.mxu0 0.0
  %1329 = vmatprep.subr.mxu0 0.0
  %1330 = vmatpush1.msra.mxu0 0.0
  %1331 = vmatprep.subr.mxu0 0.0
  %1332 = vmatpush1.msra.mxu0 0.0
  %1333 = vmatprep.subr.mxu0 0.0
  %1334 = vmatpush1.msra.mxu0 0.0
  %1335 = vmatprep.subr.mxu0 0.0
  %1336 = vmatpush1.msra.mxu0 0.0
  %1337 = vmatprep.subr.mxu0 0.0
  %1338 = vmatpush1.msra.mxu0 0.0
  %1339 = vmatprep.mubr.f32.mxu0 0.0
  %1340 = vmatmul.mubr.f32.gmra.mrb[0].mxu0 %v1273
  %v1341 = vpop.f32.mrb[0].mxu0
  %v1342 = vadd.f32 0.0, %v1341
  %v1343 = vpop.f32.mrb[0].mxu0
  %1344 = vdwg.mxu0
  %v1346 = vsel %vm404, %v751, 0
  %1348 = vmatprep.subr.mxu0 0.0
  %1349 = vmatpush1.msra.mxu0 %v410
  %1350 = vmatprep.subr.mxu0 0.0
  %1351 = vmatpush1.msra.mxu0 0.0
  %1352 = vmatprep.subr.mxu0 0.0
  %1353 = vmatpush1.msra.mxu0 0.0
  %1354 = vmatprep.subr.mxu0 0.0
  %1355 = vmatpush1.msra.mxu0 0.0
  %1356 = vmatprep.subr.mxu0 0.0
  %1357 = vmatpush1.msra.mxu0 0.0
  %1358 = vmatprep.subr.mxu0 0.0
  %1359 = vmatpush1.msra.mxu0 0.0
  %1360 = vmatprep.subr.mxu0 0.0
  %1361 = vmatpush1.msra.mxu0 0.0
  %1362 = vmatprep.subr.mxu0 0.0
  %1363 = vmatpush1.msra.mxu0 0.0
  %1364 = vmatprep.subr.mxu0 0.0
  %1365 = vmatpush1.msra.mxu0 0.0
  %1366 = vmatprep.subr.mxu0 0.0
  %1367 = vmatpush1.msra.mxu0 0.0
  %1368 = vmatprep.subr.mxu0 0.0
  %1369 = vmatpush1.msra.mxu0 0.0
  %1370 = vmatprep.subr.mxu0 0.0
  %1371 = vmatpush1.msra.mxu0 0.0
  %1372 = vmatprep.subr.mxu0 0.0
  %1373 = vmatpush1.msra.mxu0 0.0
  %1374 = vmatprep.subr.mxu0 0.0
  %1375 = vmatpush1.msra.mxu0 0.0
  %1376 = vmatprep.subr.mxu0 0.0
  %1377 = vmatpush1.msra.mxu0 0.0
  %1378 = vmatprep.subr.mxu0 0.0
  %1379 = vmatpush1.msra.mxu0 0.0
  %1380 = vmatprep.subr.mxu0 0.0
  %1381 = vmatpush1.msra.mxu0 0.0
  %1382 = vmatprep.subr.mxu0 0.0
  %1383 = vmatpush1.msra.mxu0 0.0
  %1384 = vmatprep.subr.mxu0 0.0
  %1385 = vmatpush1.msra.mxu0 0.0
  %1386 = vmatprep.subr.mxu0 0.0
  %1387 = vmatpush1.msra.mxu0 0.0
  %1388 = vmatprep.subr.mxu0 0.0
  %1389 = vmatpush1.msra.mxu0 0.0
  %1390 = vmatprep.subr.mxu0 0.0
  %1391 = vmatpush1.msra.mxu0 0.0
  %1392 = vmatprep.subr.mxu0 0.0
  %1393 = vmatpush1.msra.mxu0 0.0
  %1394 = vmatprep.subr.mxu0 0.0
  %1395 = vmatpush1.msra.mxu0 0.0
  %1396 = vmatprep.subr.mxu0 0.0
  %1397 = vmatpush1.msra.mxu0 0.0
  %1398 = vmatprep.subr.mxu0 0.0
  %1399 = vmatpush1.msra.mxu0 0.0
  %1400 = vmatprep.subr.mxu0 0.0
  %1401 = vmatpush1.msra.mxu0 0.0
  %1402 = vmatprep.subr.mxu0 0.0
  %1403 = vmatpush1.msra.mxu0 0.0
  %1404 = vmatprep.subr.mxu0 0.0
  %1405 = vmatpush1.msra.mxu0 0.0
  %1406 = vmatprep.subr.mxu0 0.0
  %1407 = vmatpush1.msra.mxu0 0.0
  %1408 = vmatprep.subr.mxu0 0.0
  %1409 = vmatpush1.msra.mxu0 0.0
  %1410 = vmatprep.subr.mxu0 0.0
  %1411 = vmatpush1.msra.mxu0 0.0
  %1412 = vmatprep.mubr.f32.mxu0 0.0
  %1413 = vmatmul.mubr.f32.gmra.mrb[0].mxu0 %v1346
  %v1414 = vpop.f32.mrb[0].mxu0
  %v1415 = vadd.f32 0.0, %v1414
  %v1416 = vpop.f32.mrb[0].mxu0
  %1417 = vdwg.mxu0
  %v1418 = vlaneseq
  %v1419 = vshrl.u32 %v1418, 7
  %v1420 = vsub.s32 0, %v1419
  %v1421 = vrot.slane %v1342, %v1420
  %v1422 = vmul.f32 %v1174, %v1421
  %v1423 = vmul.f32 %v1175, %v1421
  %v1424 = vmul.f32 %v1176, %v1421
  %v1425 = vmul.f32 %v1177, %v1421
  %v1426 = vlaneseq
  %v1427 = vshrl.u32 %v1426, 7
  %v1428 = vsub.s32 0, %v1427
  %v1429 = vrot.slane %v1415, %v1428
  %v1430 = vadd.f32 %v1422, %v1429
  %v1431 = vadd.f32 %v1423, %v1429
  %v1432 = vadd.f32 %v1424, %v1429
  %v1433 = vadd.f32 %v1425, %v1429
  %v1434 = vmax.f32 %v1430, 0.0
  %v1435 = vmax.f32 %v1431, 0.0
  %v1436 = vmax.f32 %v1432, 0.0
  %v1437 = vmax.f32 %v1433, 0.0
  %1438 = vst.msk [vmem:[%s6] sm:$0xff] %vm23, %v1434
  %1439 = vst.msk [vmem:[%s6 + $0x8] sm:$0xff] %vm23, %v1435
  %1440 = vst.msk [vmem:[%s6 + $0x10] sm:$0xff] %vm23, %v1436
  %1441 = vst.msk [vmem:[%s6 + $0x18] sm:$0xff] %vm23, %v1437
  // Predicated region
  $region26: #{basic_block_forward.1} parent=0 // pred_check
    _
  $region27: #{basic_block_forward.1} parent=0 // pred_check_branch
    %1443 = sbr.rel (0) target = $region29
  $region28: #{basic_block_forward.1} parent=0 // pred_region
    _
  $region29: #{basic_block_forward.1} parent=0 // pred_fallthru
    _
  // Predicated region
  $region30: #{basic_block_forward.1} parent=0 // pred_check
    _
  $region31: #{basic_block_forward.1} parent=0 // pred_check_branch
    %1445 = sbr.rel (0) target = $region33
  $region32: #{basic_block_forward.1} parent=0 // pred_region
    _
  $region33: #{basic_block_forward.1} parent=0 // pred_fallthru
    _

</llo_original>
